<compile_context>
chip_gen: v7x
topology: tpu7x:2x2x1
jax: 0.10.0
libtpu: 0.0.40
codegen_flags: <defaults>
</compile_context>

<pallas_src>
import math

import jax
import jax.numpy as jnp
from jax.experimental import pallas as pl
from jax.experimental.pallas import tpu as pltpu


def _word2vec_kernel(ids_ref, emb_hbm, wt_ref, b_ref, logits_ref, e_ref,
                     e_buf, sems):
    """One grid step computes one (B, TV) tile of the logits.

    ids_ref   : SMEM (B,)   int32    (scalar prefetch)
    emb_hbm   : HBM  (V, E)          (raw ref, manual DMA row gather)
    wt_ref    : VMEM (E, TV)         (pre-transposed weight tile)
    b_ref     : VMEM (1, TV) f32     (bias tile)
    logits_ref: VMEM (B, TV)         (output tile)
    e_ref     : VMEM (B, E)          (output, resident across the whole grid)
    e_buf     : VMEM (B, E) scratch  (gathered embedding rows)
    sems      : DMA semaphores, one per batch row
    """
    j = pl.program_id(0)
    B = e_buf.shape[0]

    @pl.when(j == 0)
    def _gather_embeddings():
        # B small row DMAs HBM -> VMEM: issue all, then wait all.
        for i in range(B):
            pltpu.make_async_copy(
                emb_hbm.at[pl.ds(ids_ref[i], 1), :],
                e_buf.at[pl.ds(i, 1), :],
                sems.at[i],
            ).start()
        for i in range(B):
            pltpu.make_async_copy(
                emb_hbm.at[pl.ds(ids_ref[i], 1), :],
                e_buf.at[pl.ds(i, 1), :],
                sems.at[i],
            ).wait()
        # `e` output block index is constant -> resident; write it once.
        e_ref[...] = e_buf[...].astype(e_ref.dtype)

    # logits tile = e @ W^T tile + bias tile  (W already transposed to (E, V)).
    logits = jnp.dot(
        e_buf[...].astype(wt_ref.dtype),
        wt_ref[...],
        preferred_element_type=jnp.float32,
    )
    logits_ref[...] = (logits + b_ref[...].astype(jnp.float32)).astype(
        logits_ref.dtype)


def word2vec_forward(x, emb_w, lin_w, lin_b, *, block_v=512):
    """Returns (logits, e) exactly like Word2vecModel.forward.

    x:     (B,)   int token ids
    emb_w: (V, E) embedding table
    lin_w: (V, E) Linear weight (PyTorch out_features x in_features)
    lin_b: (V,)   Linear bias
    """
    B = x.shape[0]
    V, E = emb_w.shape
    assert lin_w.shape == (V, E) and lin_b.shape == (V,)

    # V-tile size: multiple of 128, sized to keep double-buffered W tiles and
    # the logits tile comfortably inside scoped VMEM on all of v5e/v6e/v7x.
    block_v = min(block_v, V)
    n_v = pl.cdiv(V, block_v)

    # Safety: TPU does not bounds-check reads; clamp ids into [0, V).
    ids = jnp.clip(x.astype(jnp.int32), 0, V - 1)

    # Pre-transpose once in the wrapper (plain XLA op, amortized) so the kernel
    # contraction feeds the MXU lane-dense in the vocab dimension.
    w_t = lin_w.T                      # (E, V)
    bias = lin_b.reshape(1, V).astype(jnp.float32)

    out_dtype = jnp.float32

    grid_spec = pltpu.PrefetchScalarGridSpec(
        num_scalar_prefetch=1,                                     # ids -> SMEM
        grid=(n_v,),
        in_specs=[
            pl.BlockSpec(memory_space=pl.ANY),                     # emb table, stays in HBM
            pl.BlockSpec((E, block_v), lambda j, ids: (0, j)),     # W^T tile
            pl.BlockSpec((1, block_v), lambda j, ids: (0, j)),     # bias tile
        ],
        out_specs=(
            pl.BlockSpec((B, block_v), lambda j, ids: (0, j)),     # logits tile
            pl.BlockSpec((B, E), lambda j, ids: (0, 0)),           # e (resident)
        ),
        scratch_shapes=[
            pltpu.VMEM((B, E), emb_w.dtype),                       # gathered rows
            pltpu.SemaphoreType.DMA((B,)),                         # one sem per row
        ],
    )

    emb_bytes = jnp.dtype(emb_w.dtype).itemsize
    w_bytes = jnp.dtype(lin_w.dtype).itemsize
    cost = pl.CostEstimate(
        flops=2 * B * V * E,
        transcendentals=0,
        bytes_accessed=(B * E * emb_bytes            # embedding row gather
                        + V * E * w_bytes            # W stream (dominant term)
                        + V * 4                      # bias
                        + B * V * 4 + B * E * 4),    # outputs
    )

    logits, e = pl.pallas_call(
        _word2vec_kernel,
        out_shape=(
            jax.ShapeDtypeStruct((B, V), out_dtype),
            jax.ShapeDtypeStruct((B, E), out_dtype),
        ),
        grid_spec=grid_spec,
        compiler_params=pltpu.CompilerParams(
            # The one-time embedding gather and the resident `e` output carry
            # state across the V-tile axis, so it must stay "arbitrary".
            dimension_semantics=("arbitrary",),
        ),
        cost_estimate=cost,
    )(ids, emb_w, w_t, bias)
    return logits, e


if __name__ == "__main__":
    # Small synthetic config consistent with the module's __init__.
    VOCAB_SIZE = 512
    EMBEDDING_SIZE = 64
    BATCH = 8
    BLOCK_V = 128            # 4 grid steps over the vocab dimension

    key = jax.random.PRNGKey(0)
    k_emb, k_w, k_b, k_x = jax.random.split(key, 4)

    # Deterministic parameter init matching the PyTorch module:
    #  - embedding weights ~ U(-1, 1)
    #  - nn.Linear default: U(-1/sqrt(in_features), 1/sqrt(in_features))
    emb_w = jax.random.uniform(
        k_emb, (VOCAB_SIZE, EMBEDDING_SIZE), jnp.float32, minval=-1.0, maxval=1.0
    )
    bound = 1.0 / math.sqrt(EMBEDDING_SIZE)
    lin_w = jax.random.uniform(
        k_w, (VOCAB_SIZE, EMBEDDING_SIZE), jnp.float32, minval=-bound, maxval=bound
    )
    lin_b = jax.random.uniform(
        k_b, (VOCAB_SIZE,), jnp.float32, minval=-bound, maxval=bound
    )

    x = jax.random.randint(k_x, (BATCH,), 0, VOCAB_SIZE, dtype=jnp.int32)

    logits, e = word2vec_forward(x, emb_w, lin_w, lin_b, block_v=BLOCK_V)
    jax.block_until_ready((logits, e))

    # Pure-JAX reference check of the forward semantics.
    e_ref = emb_w[x]
    logits_ref = e_ref @ lin_w.T + lin_b
    assert logits.shape == (BATCH, VOCAB_SIZE) and e.shape == (BATCH, EMBEDDING_SIZE)
    assert jnp.allclose(e, e_ref, atol=1e-5)
    assert jnp.allclose(logits, logits_ref, atol=1e-4, rtol=1e-4)

    print("KERNEL_OK")
</pallas_src>

<mosaic_0001>
module attributes {stable_mosaic.version = 11 : i64} {
  func.func @_word2vec_kernel(%arg0: i32, %arg1: memref<8xi32, #tpu.memory_space<smem>>, %arg2: memref<512x64xf32, #tpu.memory_space<any>>, %arg3: memref<64x128xf32, #tpu.memory_space<vmem>>, %arg4: memref<1x128xf32, #tpu.memory_space<vmem>>, %arg5: memref<8x128xf32, #tpu.memory_space<vmem>>, %arg6: memref<8x64xf32, #tpu.memory_space<vmem>>, %arg7: memref<8x64xf32, #tpu.memory_space<vmem>>, %arg8: memref<8x!tpu.dma_semaphore, #tpu.memory_space<semaphore_mem>>) attributes {dimension_semantics = [#tpu.dimension_semantics<arbitrary>], iteration_bounds = array<i64: 4>, scalar_prefetch = 1 : i64, scratch_operands = 2 : i64, tpu.core_type = #tpu.core_type<tc>, window_params = [{}, {transform_indices = @transform_1, window_bounds = array<i64: 64, 128>}, {transform_indices = @transform_2, window_bounds = array<i64: 1, 128>}, {transform_indices = @transform_3, window_bounds = array<i64: 8, 128>}, {pipeline_mode = #tpu.pipeline_mode<synchronous>, transform_indices = @transform_4, window_bounds = array<i64: 8, 64>}]} {
    %c0_i32 = arith.constant 0 : i32
    %0 = arith.cmpi eq, %arg0, %c0_i32 : i32
    %1 = arith.extui %0 : i1 to i32
    %c0_i32_0 = arith.constant 0 : i32
    %2 = arith.cmpi ne, %1, %c0_i32_0 : i32
    scf.if %2 {
      %c0_8 = arith.constant 0 : index
      %10 = memref.load %arg1[%c0_8] : memref<8xi32, #tpu.memory_space<smem>>
      %c0_i32_9 = arith.constant 0 : i32
      %c0_i32_10 = arith.constant 0 : i32
      %11 = tpu.memref_slice %arg2[%10, %c0_i32_10] : memref<512x64xf32, #tpu.memory_space<any>> -> memref<1x64xf32, #tpu.memory_space<any>>
      %c0_i32_11 = arith.constant 0 : i32
      %c0_i32_12 = arith.constant 0 : i32
      %12 = tpu.memref_slice %arg7[%c0_i32_11, %c0_i32_12] : memref<8x64xf32, #tpu.memory_space<vmem>> -> memref<1x64xf32, #tpu.memory_space<vmem>>
      %13 = tpu.memref_slice %arg8[%c0_i32_9] : memref<8x!tpu.dma_semaphore, #tpu.memory_space<semaphore_mem>> -> memref<1x!tpu.dma_semaphore, #tpu.memory_space<semaphore_mem>>
      %14 = tpu.memref_squeeze %13 : memref<1x!tpu.dma_semaphore, #tpu.memory_space<semaphore_mem>> -> memref<!tpu.dma_semaphore, #tpu.memory_space<semaphore_mem>>
      tpu.enqueue_dma source(%11 : memref<1x64xf32, #tpu.memory_space<any>>) target(%12 : memref<1x64xf32, #tpu.memory_space<vmem>>) target_semaphore(%14 : memref<!tpu.dma_semaphore, #tpu.memory_space<semaphore_mem>>)
      %c1 = arith.constant 1 : index
      %15 = memref.load %arg1[%c1] : memref<8xi32, #tpu.memory_space<smem>>
      %c1_i32 = arith.constant 1 : i32
      %c0_i32_13 = arith.constant 0 : i32
      %16 = tpu.memref_slice %arg2[%15, %c0_i32_13] : memref<512x64xf32, #tpu.memory_space<any>> -> memref<1x64xf32, #tpu.memory_space<any>>
      %c1_i32_14 = arith.constant 1 : i32
      %c0_i32_15 = arith.constant 0 : i32
      %17 = tpu.memref_slice %arg7[%c1_i32_14, %c0_i32_15] : memref<8x64xf32, #tpu.memory_space<vmem>> -> memref<1x64xf32, #tpu.memory_space<vmem>>
      %18 = tpu.memref_slice %arg8[%c1_i32] : memref<8x!tpu.dma_semaphore, #tpu.memory_space<semaphore_mem>> -> memref<1x!tpu.dma_semaphore, #tpu.memory_space<semaphore_mem>>
      %19 = tpu.memref_squeeze %18 : memref<1x!tpu.dma_semaphore, #tpu.memory_space<semaphore_mem>> -> memref<!tpu.dma_semaphore, #tpu.memory_space<semaphore_mem>>
      tpu.enqueue_dma source(%16 : memref<1x64xf32, #tpu.memory_space<any>>) target(%17 : memref<1x64xf32, #tpu.memory_space<vmem>>) target_semaphore(%19 : memref<!tpu.dma_semaphore, #tpu.memory_space<semaphore_mem>>)
      %c2 = arith.constant 2 : index
      %20 = memref.load %arg1[%c2] : memref<8xi32, #tpu.memory_space<smem>>
      %c2_i32 = arith.constant 2 : i32
      %c0_i32_16 = arith.constant 0 : i32
      %21 = tpu.memref_slice %arg2[%20, %c0_i32_16] : memref<512x64xf32, #tpu.memory_space<any>> -> memref<1x64xf32, #tpu.memory_space<any>>
      %c2_i32_17 = arith.constant 2 : i32
      %c0_i32_18 = arith.constant 0 : i32
      %22 = tpu.memref_slice %arg7[%c2_i32_17, %c0_i32_18] : memref<8x64xf32, #tpu.memory_space<vmem>> -> memref<1x64xf32, #tpu.memory_space<vmem>>
      %23 = tpu.memref_slice %arg8[%c2_i32] : memref<8x!tpu.dma_semaphore, #tpu.memory_space<semaphore_mem>> -> memref<1x!tpu.dma_semaphore, #tpu.memory_space<semaphore_mem>>
      %24 = tpu.memref_squeeze %23 : memref<1x!tpu.dma_semaphore, #tpu.memory_space<semaphore_mem>> -> memref<!tpu.dma_semaphore, #tpu.memory_space<semaphore_mem>>
      tpu.enqueue_dma source(%21 : memref<1x64xf32, #tpu.memory_space<any>>) target(%22 : memref<1x64xf32, #tpu.memory_space<vmem>>) target_semaphore(%24 : memref<!tpu.dma_semaphore, #tpu.memory_space<semaphore_mem>>)
      %c3 = arith.constant 3 : index
      %25 = memref.load %arg1[%c3] : memref<8xi32, #tpu.memory_space<smem>>
      %c3_i32 = arith.constant 3 : i32
      %c0_i32_19 = arith.constant 0 : i32
      %26 = tpu.memref_slice %arg2[%25, %c0_i32_19] : memref<512x64xf32, #tpu.memory_space<any>> -> memref<1x64xf32, #tpu.memory_space<any>>
      %c3_i32_20 = arith.constant 3 : i32
      %c0_i32_21 = arith.constant 0 : i32
      %27 = tpu.memref_slice %arg7[%c3_i32_20, %c0_i32_21] : memref<8x64xf32, #tpu.memory_space<vmem>> -> memref<1x64xf32, #tpu.memory_space<vmem>>
      %28 = tpu.memref_slice %arg8[%c3_i32] : memref<8x!tpu.dma_semaphore, #tpu.memory_space<semaphore_mem>> -> memref<1x!tpu.dma_semaphore, #tpu.memory_space<semaphore_mem>>
      %29 = tpu.memref_squeeze %28 : memref<1x!tpu.dma_semaphore, #tpu.memory_space<semaphore_mem>> -> memref<!tpu.dma_semaphore, #tpu.memory_space<semaphore_mem>>
      tpu.enqueue_dma source(%26 : memref<1x64xf32, #tpu.memory_space<any>>) target(%27 : memref<1x64xf32, #tpu.memory_space<vmem>>) target_semaphore(%29 : memref<!tpu.dma_semaphore, #tpu.memory_space<semaphore_mem>>)
      %c4 = arith.constant 4 : index
      %30 = memref.load %arg1[%c4] : memref<8xi32, #tpu.memory_space<smem>>
      %c4_i32 = arith.constant 4 : i32
      %c0_i32_22 = arith.constant 0 : i32
      %31 = tpu.memref_slice %arg2[%30, %c0_i32_22] : memref<512x64xf32, #tpu.memory_space<any>> -> memref<1x64xf32, #tpu.memory_space<any>>
      %c4_i32_23 = arith.constant 4 : i32
      %c0_i32_24 = arith.constant 0 : i32
      %32 = tpu.memref_slice %arg7[%c4_i32_23, %c0_i32_24] : memref<8x64xf32, #tpu.memory_space<vmem>> -> memref<1x64xf32, #tpu.memory_space<vmem>>
      %33 = tpu.memref_slice %arg8[%c4_i32] : memref<8x!tpu.dma_semaphore, #tpu.memory_space<semaphore_mem>> -> memref<1x!tpu.dma_semaphore, #tpu.memory_space<semaphore_mem>>
      %34 = tpu.memref_squeeze %33 : memref<1x!tpu.dma_semaphore, #tpu.memory_space<semaphore_mem>> -> memref<!tpu.dma_semaphore, #tpu.memory_space<semaphore_mem>>
      tpu.enqueue_dma source(%31 : memref<1x64xf32, #tpu.memory_space<any>>) target(%32 : memref<1x64xf32, #tpu.memory_space<vmem>>) target_semaphore(%34 : memref<!tpu.dma_semaphore, #tpu.memory_space<semaphore_mem>>)
      %c5 = arith.constant 5 : index
      %35 = memref.load %arg1[%c5] : memref<8xi32, #tpu.memory_space<smem>>
      %c5_i32 = arith.constant 5 : i32
      %c0_i32_25 = arith.constant 0 : i32
      %36 = tpu.memref_slice %arg2[%35, %c0_i32_25] : memref<512x64xf32, #tpu.memory_space<any>> -> memref<1x64xf32, #tpu.memory_space<any>>
      %c5_i32_26 = arith.constant 5 : i32
      %c0_i32_27 = arith.constant 0 : i32
      %37 = tpu.memref_slice %arg7[%c5_i32_26, %c0_i32_27] : memref<8x64xf32, #tpu.memory_space<vmem>> -> memref<1x64xf32, #tpu.memory_space<vmem>>
      %38 = tpu.memref_slice %arg8[%c5_i32] : memref<8x!tpu.dma_semaphore, #tpu.memory_space<semaphore_mem>> -> memref<1x!tpu.dma_semaphore, #tpu.memory_space<semaphore_mem>>
      %39 = tpu.memref_squeeze %38 : memref<1x!tpu.dma_semaphore, #tpu.memory_space<semaphore_mem>> -> memref<!tpu.dma_semaphore, #tpu.memory_space<semaphore_mem>>
      tpu.enqueue_dma source(%36 : memref<1x64xf32, #tpu.memory_space<any>>) target(%37 : memref<1x64xf32, #tpu.memory_space<vmem>>) target_semaphore(%39 : memref<!tpu.dma_semaphore, #tpu.memory_space<semaphore_mem>>)
      %c6 = arith.constant 6 : index
      %40 = memref.load %arg1[%c6] : memref<8xi32, #tpu.memory_space<smem>>
      %c6_i32 = arith.constant 6 : i32
      %c0_i32_28 = arith.constant 0 : i32
      %41 = tpu.memref_slice %arg2[%40, %c0_i32_28] : memref<512x64xf32, #tpu.memory_space<any>> -> memref<1x64xf32, #tpu.memory_space<any>>
      %c6_i32_29 = arith.constant 6 : i32
      %c0_i32_30 = arith.constant 0 : i32
      %42 = tpu.memref_slice %arg7[%c6_i32_29, %c0_i32_30] : memref<8x64xf32, #tpu.memory_space<vmem>> -> memref<1x64xf32, #tpu.memory_space<vmem>>
      %43 = tpu.memref_slice %arg8[%c6_i32] : memref<8x!tpu.dma_semaphore, #tpu.memory_space<semaphore_mem>> -> memref<1x!tpu.dma_semaphore, #tpu.memory_space<semaphore_mem>>
      %44 = tpu.memref_squeeze %43 : memref<1x!tpu.dma_semaphore, #tpu.memory_space<semaphore_mem>> -> memref<!tpu.dma_semaphore, #tpu.memory_space<semaphore_mem>>
      tpu.enqueue_dma source(%41 : memref<1x64xf32, #tpu.memory_space<any>>) target(%42 : memref<1x64xf32, #tpu.memory_space<vmem>>) target_semaphore(%44 : memref<!tpu.dma_semaphore, #tpu.memory_space<semaphore_mem>>)
      %c7 = arith.constant 7 : index
      %45 = memref.load %arg1[%c7] : memref<8xi32, #tpu.memory_space<smem>>
      %c7_i32 = arith.constant 7 : i32
      %c0_i32_31 = arith.constant 0 : i32
      %46 = tpu.memref_slice %arg2[%45, %c0_i32_31] : memref<512x64xf32, #tpu.memory_space<any>> -> memref<1x64xf32, #tpu.memory_space<any>>
      %c7_i32_32 = arith.constant 7 : i32
      %c0_i32_33 = arith.constant 0 : i32
      %47 = tpu.memref_slice %arg7[%c7_i32_32, %c0_i32_33] : memref<8x64xf32, #tpu.memory_space<vmem>> -> memref<1x64xf32, #tpu.memory_space<vmem>>
      %48 = tpu.memref_slice %arg8[%c7_i32] : memref<8x!tpu.dma_semaphore, #tpu.memory_space<semaphore_mem>> -> memref<1x!tpu.dma_semaphore, #tpu.memory_space<semaphore_mem>>
      %49 = tpu.memref_squeeze %48 : memref<1x!tpu.dma_semaphore, #tpu.memory_space<semaphore_mem>> -> memref<!tpu.dma_semaphore, #tpu.memory_space<semaphore_mem>>
      tpu.enqueue_dma source(%46 : memref<1x64xf32, #tpu.memory_space<any>>) target(%47 : memref<1x64xf32, #tpu.memory_space<vmem>>) target_semaphore(%49 : memref<!tpu.dma_semaphore, #tpu.memory_space<semaphore_mem>>)
      %c0_34 = arith.constant 0 : index
      %50 = memref.load %arg1[%c0_34] : memref<8xi32, #tpu.memory_space<smem>>
      %c0_i32_35 = arith.constant 0 : i32
      %c0_i32_36 = arith.constant 0 : i32
      %51 = tpu.memref_slice %arg2[%50, %c0_i32_36] : memref<512x64xf32, #tpu.memory_space<any>> -> memref<1x64xf32, #tpu.memory_space<any>>
      %c0_i32_37 = arith.constant 0 : i32
      %c0_i32_38 = arith.constant 0 : i32
      %52 = tpu.memref_slice %arg7[%c0_i32_37, %c0_i32_38] : memref<8x64xf32, #tpu.memory_space<vmem>> -> memref<1x64xf32, #tpu.memory_space<vmem>>
      %53 = tpu.memref_slice %arg8[%c0_i32_35] : memref<8x!tpu.dma_semaphore, #tpu.memory_space<semaphore_mem>> -> memref<1x!tpu.dma_semaphore, #tpu.memory_space<semaphore_mem>>
      %54 = tpu.memref_squeeze %53 : memref<1x!tpu.dma_semaphore, #tpu.memory_space<semaphore_mem>> -> memref<!tpu.dma_semaphore, #tpu.memory_space<semaphore_mem>>
      tpu.wait_dma2 semaphore(%54 : memref<!tpu.dma_semaphore, #tpu.memory_space<semaphore_mem>>) src(%51 : memref<1x64xf32, #tpu.memory_space<any>>) dst(%52 : memref<1x64xf32, #tpu.memory_space<vmem>>)
      %c1_39 = arith.constant 1 : index
      %55 = memref.load %arg1[%c1_39] : memref<8xi32, #tpu.memory_space<smem>>
      %c1_i32_40 = arith.constant 1 : i32
      %c0_i32_41 = arith.constant 0 : i32
      %56 = tpu.memref_slice %arg2[%55, %c0_i32_41] : memref<512x64xf32, #tpu.memory_space<any>> -> memref<1x64xf32, #tpu.memory_space<any>>
      %c1_i32_42 = arith.constant 1 : i32
      %c0_i32_43 = arith.constant 0 : i32
      %57 = tpu.memref_slice %arg7[%c1_i32_42, %c0_i32_43] : memref<8x64xf32, #tpu.memory_space<vmem>> -> memref<1x64xf32, #tpu.memory_space<vmem>>
      %58 = tpu.memref_slice %arg8[%c1_i32_40] : memref<8x!tpu.dma_semaphore, #tpu.memory_space<semaphore_mem>> -> memref<1x!tpu.dma_semaphore, #tpu.memory_space<semaphore_mem>>
      %59 = tpu.memref_squeeze %58 : memref<1x!tpu.dma_semaphore, #tpu.memory_space<semaphore_mem>> -> memref<!tpu.dma_semaphore, #tpu.memory_space<semaphore_mem>>
      tpu.wait_dma2 semaphore(%59 : memref<!tpu.dma_semaphore, #tpu.memory_space<semaphore_mem>>) src(%56 : memref<1x64xf32, #tpu.memory_space<any>>) dst(%57 : memref<1x64xf32, #tpu.memory_space<vmem>>)
      %c2_44 = arith.constant 2 : index
      %60 = memref.load %arg1[%c2_44] : memref<8xi32, #tpu.memory_space<smem>>
      %c2_i32_45 = arith.constant 2 : i32
      %c0_i32_46 = arith.constant 0 : i32
      %61 = tpu.memref_slice %arg2[%60, %c0_i32_46] : memref<512x64xf32, #tpu.memory_space<any>> -> memref<1x64xf32, #tpu.memory_space<any>>
      %c2_i32_47 = arith.constant 2 : i32
      %c0_i32_48 = arith.constant 0 : i32
      %62 = tpu.memref_slice %arg7[%c2_i32_47, %c0_i32_48] : memref<8x64xf32, #tpu.memory_space<vmem>> -> memref<1x64xf32, #tpu.memory_space<vmem>>
      %63 = tpu.memref_slice %arg8[%c2_i32_45] : memref<8x!tpu.dma_semaphore, #tpu.memory_space<semaphore_mem>> -> memref<1x!tpu.dma_semaphore, #tpu.memory_space<semaphore_mem>>
      %64 = tpu.memref_squeeze %63 : memref<1x!tpu.dma_semaphore, #tpu.memory_space<semaphore_mem>> -> memref<!tpu.dma_semaphore, #tpu.memory_space<semaphore_mem>>
      tpu.wait_dma2 semaphore(%64 : memref<!tpu.dma_semaphore, #tpu.memory_space<semaphore_mem>>) src(%61 : memref<1x64xf32, #tpu.memory_space<any>>) dst(%62 : memref<1x64xf32, #tpu.memory_space<vmem>>)
      %c3_49 = arith.constant 3 : index
      %65 = memref.load %arg1[%c3_49] : memref<8xi32, #tpu.memory_space<smem>>
      %c3_i32_50 = arith.constant 3 : i32
      %c0_i32_51 = arith.constant 0 : i32
      %66 = tpu.memref_slice %arg2[%65, %c0_i32_51] : memref<512x64xf32, #tpu.memory_space<any>> -> memref<1x64xf32, #tpu.memory_space<any>>
      %c3_i32_52 = arith.constant 3 : i32
      %c0_i32_53 = arith.constant 0 : i32
      %67 = tpu.memref_slice %arg7[%c3_i32_52, %c0_i32_53] : memref<8x64xf32, #tpu.memory_space<vmem>> -> memref<1x64xf32, #tpu.memory_space<vmem>>
      %68 = tpu.memref_slice %arg8[%c3_i32_50] : memref<8x!tpu.dma_semaphore, #tpu.memory_space<semaphore_mem>> -> memref<1x!tpu.dma_semaphore, #tpu.memory_space<semaphore_mem>>
      %69 = tpu.memref_squeeze %68 : memref<1x!tpu.dma_semaphore, #tpu.memory_space<semaphore_mem>> -> memref<!tpu.dma_semaphore, #tpu.memory_space<semaphore_mem>>
      tpu.wait_dma2 semaphore(%69 : memref<!tpu.dma_semaphore, #tpu.memory_space<semaphore_mem>>) src(%66 : memref<1x64xf32, #tpu.memory_space<any>>) dst(%67 : memref<1x64xf32, #tpu.memory_space<vmem>>)
      %c4_54 = arith.constant 4 : index
      %70 = memref.load %arg1[%c4_54] : memref<8xi32, #tpu.memory_space<smem>>
      %c4_i32_55 = arith.constant 4 : i32
      %c0_i32_56 = arith.constant 0 : i32
      %71 = tpu.memref_slice %arg2[%70, %c0_i32_56] : memref<512x64xf32, #tpu.memory_space<any>> -> memref<1x64xf32, #tpu.memory_space<any>>
      %c4_i32_57 = arith.constant 4 : i32
      %c0_i32_58 = arith.constant 0 : i32
      %72 = tpu.memref_slice %arg7[%c4_i32_57, %c0_i32_58] : memref<8x64xf32, #tpu.memory_space<vmem>> -> memref<1x64xf32, #tpu.memory_space<vmem>>
      %73 = tpu.memref_slice %arg8[%c4_i32_55] : memref<8x!tpu.dma_semaphore, #tpu.memory_space<semaphore_mem>> -> memref<1x!tpu.dma_semaphore, #tpu.memory_space<semaphore_mem>>
      %74 = tpu.memref_squeeze %73 : memref<1x!tpu.dma_semaphore, #tpu.memory_space<semaphore_mem>> -> memref<!tpu.dma_semaphore, #tpu.memory_space<semaphore_mem>>
      tpu.wait_dma2 semaphore(%74 : memref<!tpu.dma_semaphore, #tpu.memory_space<semaphore_mem>>) src(%71 : memref<1x64xf32, #tpu.memory_space<any>>) dst(%72 : memref<1x64xf32, #tpu.memory_space<vmem>>)
      %c5_59 = arith.constant 5 : index
      %75 = memref.load %arg1[%c5_59] : memref<8xi32, #tpu.memory_space<smem>>
      %c5_i32_60 = arith.constant 5 : i32
      %c0_i32_61 = arith.constant 0 : i32
      %76 = tpu.memref_slice %arg2[%75, %c0_i32_61] : memref<512x64xf32, #tpu.memory_space<any>> -> memref<1x64xf32, #tpu.memory_space<any>>
      %c5_i32_62 = arith.constant 5 : i32
      %c0_i32_63 = arith.constant 0 : i32
      %77 = tpu.memref_slice %arg7[%c5_i32_62, %c0_i32_63] : memref<8x64xf32, #tpu.memory_space<vmem>> -> memref<1x64xf32, #tpu.memory_space<vmem>>
      %78 = tpu.memref_slice %arg8[%c5_i32_60] : memref<8x!tpu.dma_semaphore, #tpu.memory_space<semaphore_mem>> -> memref<1x!tpu.dma_semaphore, #tpu.memory_space<semaphore_mem>>
      %79 = tpu.memref_squeeze %78 : memref<1x!tpu.dma_semaphore, #tpu.memory_space<semaphore_mem>> -> memref<!tpu.dma_semaphore, #tpu.memory_space<semaphore_mem>>
      tpu.wait_dma2 semaphore(%79 : memref<!tpu.dma_semaphore, #tpu.memory_space<semaphore_mem>>) src(%76 : memref<1x64xf32, #tpu.memory_space<any>>) dst(%77 : memref<1x64xf32, #tpu.memory_space<vmem>>)
      %c6_64 = arith.constant 6 : index
      %80 = memref.load %arg1[%c6_64] : memref<8xi32, #tpu.memory_space<smem>>
      %c6_i32_65 = arith.constant 6 : i32
      %c0_i32_66 = arith.constant 0 : i32
      %81 = tpu.memref_slice %arg2[%80, %c0_i32_66] : memref<512x64xf32, #tpu.memory_space<any>> -> memref<1x64xf32, #tpu.memory_space<any>>
      %c6_i32_67 = arith.constant 6 : i32
      %c0_i32_68 = arith.constant 0 : i32
      %82 = tpu.memref_slice %arg7[%c6_i32_67, %c0_i32_68] : memref<8x64xf32, #tpu.memory_space<vmem>> -> memref<1x64xf32, #tpu.memory_space<vmem>>
      %83 = tpu.memref_slice %arg8[%c6_i32_65] : memref<8x!tpu.dma_semaphore, #tpu.memory_space<semaphore_mem>> -> memref<1x!tpu.dma_semaphore, #tpu.memory_space<semaphore_mem>>
      %84 = tpu.memref_squeeze %83 : memref<1x!tpu.dma_semaphore, #tpu.memory_space<semaphore_mem>> -> memref<!tpu.dma_semaphore, #tpu.memory_space<semaphore_mem>>
      tpu.wait_dma2 semaphore(%84 : memref<!tpu.dma_semaphore, #tpu.memory_space<semaphore_mem>>) src(%81 : memref<1x64xf32, #tpu.memory_space<any>>) dst(%82 : memref<1x64xf32, #tpu.memory_space<vmem>>)
      %c7_69 = arith.constant 7 : index
      %85 = memref.load %arg1[%c7_69] : memref<8xi32, #tpu.memory_space<smem>>
      %c7_i32_70 = arith.constant 7 : i32
      %c0_i32_71 = arith.constant 0 : i32
      %86 = tpu.memref_slice %arg2[%85, %c0_i32_71] : memref<512x64xf32, #tpu.memory_space<any>> -> memref<1x64xf32, #tpu.memory_space<any>>
      %c7_i32_72 = arith.constant 7 : i32
      %c0_i32_73 = arith.constant 0 : i32
      %87 = tpu.memref_slice %arg7[%c7_i32_72, %c0_i32_73] : memref<8x64xf32, #tpu.memory_space<vmem>> -> memref<1x64xf32, #tpu.memory_space<vmem>>
      %88 = tpu.memref_slice %arg8[%c7_i32_70] : memref<8x!tpu.dma_semaphore, #tpu.memory_space<semaphore_mem>> -> memref<1x!tpu.dma_semaphore, #tpu.memory_space<semaphore_mem>>
      %89 = tpu.memref_squeeze %88 : memref<1x!tpu.dma_semaphore, #tpu.memory_space<semaphore_mem>> -> memref<!tpu.dma_semaphore, #tpu.memory_space<semaphore_mem>>
      tpu.wait_dma2 semaphore(%89 : memref<!tpu.dma_semaphore, #tpu.memory_space<semaphore_mem>>) src(%86 : memref<1x64xf32, #tpu.memory_space<any>>) dst(%87 : memref<1x64xf32, #tpu.memory_space<vmem>>)
      %c0_74 = arith.constant 0 : index
      %c0_75 = arith.constant 0 : index
      %90 = vector.load %arg7[%c0_74, %c0_75] : memref<8x64xf32, #tpu.memory_space<vmem>>, vector<8x64xf32>
      %c0_76 = arith.constant 0 : index
      %c0_77 = arith.constant 0 : index
      %91 = vector.load %arg6[%c0_76, %c0_77] : memref<8x64xf32, #tpu.memory_space<vmem>>, vector<8x64xf32>
      tpu.vector_store %arg6[%c0_76, %c0_77], %90 {strides = array<i32>} : memref<8x64xf32, #tpu.memory_space<vmem>>, vector<8x64xf32>,
    } else {
    }
    %c0 = arith.constant 0 : index
    %c0_1 = arith.constant 0 : index
    %3 = vector.load %arg7[%c0, %c0_1] : memref<8x64xf32, #tpu.memory_space<vmem>>, vector<8x64xf32>
    %c0_2 = arith.constant 0 : index
    %c0_3 = arith.constant 0 : index
    %4 = vector.load %arg3[%c0_2, %c0_3] : memref<64x128xf32, #tpu.memory_space<vmem>>, vector<64x128xf32>
    %cst = arith.constant dense<0.000000e+00> : vector<8x128xf32>
    %5 = tpu.matmul %3, %4, %cst {dimension_numbers = #tpu.dot_dimension_numbers<[1], [0], [0], [1], [0, 0, 1, 1], [], []>} : vector<8x64xf32>, vector<64x128xf32>, vector<8x128xf32> -> vector<8x128xf32>
    %c0_4 = arith.constant 0 : index
    %c0_5 = arith.constant 0 : index
    %6 = vector.load %arg4[%c0_4, %c0_5] : memref<1x128xf32, #tpu.memory_space<vmem>>, vector<1x128xf32>
    %7 = vector.broadcast %6 : vector<1x128xf32> to vector<8x128xf32>
    %8 = arith.addf %5, %7 : vector<8x128xf32>
    %c0_6 = arith.constant 0 : index
    %c0_7 = arith.constant 0 : index
    %9 = vector.load %arg5[%c0_6, %c0_7] : memref<8x128xf32, #tpu.memory_space<vmem>>, vector<8x128xf32>
    tpu.vector_store %arg5[%c0_6, %c0_7], %8 {strides = array<i32>} : memref<8x128xf32, #tpu.memory_space<vmem>>, vector<8x128xf32>,
    return
  }
  func.func @transform_1(%arg0: i32, %arg1: memref<8xi32, #tpu.memory_space<smem>>) -> (i32, i32) {
    %c0_i32 = arith.constant 0 : i32
    %c0_i32_0 = arith.constant 0 : i32
    return %c0_i32, %arg0 : i32, i32
  }
  func.func @transform_2(%arg0: i32, %arg1: memref<8xi32, #tpu.memory_space<smem>>) -> (i32, i32) {
    %c0_i32 = arith.constant 0 : i32
    %c0_i32_0 = arith.constant 0 : i32
    return %c0_i32, %arg0 : i32, i32
  }
  func.func @transform_3(%arg0: i32, %arg1: memref<8xi32, #tpu.memory_space<smem>>) -> (i32, i32) {
    %c0_i32 = arith.constant 0 : i32
    %c0_i32_0 = arith.constant 0 : i32
    return %c0_i32, %arg0 : i32, i32
  }
  func.func @transform_4(%arg0: i32, %arg1: memref<8xi32, #tpu.memory_space<smem>>) -> (i32, i32) {
    %c0_i32 = arith.constant 0 : i32
    %c0_i32_0 = arith.constant 0 : i32
    %c0_i32_1 = arith.constant 0 : i32
    return %c0_i32, %c0_i32_0 : i32, i32
  }
}

</mosaic_0001>

<llo_original>
// kernel: tpu_custom_call.1
$region0: #{tpu_custom_call.1}
  #allocation0 [shape = 'u32[]', space=smem, size = 0x4, offset = 0x4, fixed_abs, tag = 'smem constant byte address 0x4 - core index']
  #allocation1 [shape = 'u32[144,128]{1,0:T(1,128)}', space=vmem, size = 0x12000, scoped, tag = 'internal scratch']
  #allocation2 [shape = 'f32[8,64]{1,0:T(8,128)}', space=vmem, size = 0x1000, scoped, tag = 'scratch operand']
  #allocation3 [shape = 's32[8]{0}', space=sflag, size = 0x20, scoped, tag = 'scratch operand']
  #allocation4 [shape = 's32[1]{0}', space=sflag, size = 0x4, scoped, tag = 'scoped memory for tpu_custom_call.1']
  #allocation5 [shape = 'u8[512]{0}', space=smem, size = 0x200, scoped, tag = 'prefetched SMEM operand 0']
  #allocation11 [shape = 's32[]', space=sflag, size = 0x4, offset = 0, fixed_abs, tag = 'sflag constant byte address 0x0 - dummy sync flag']
  #allocation12 [shape = 's32[]', space=sflag, size = 0x4, offset = 0, fixed_abs, tag = 'sflag constant byte address 0x0 - dummy sync flag']
  #allocation13 [shape = 's32[]', space=sflag, size = 0x4, offset = 0, fixed_abs, tag = 'sflag constant byte address 0x0 - dummy sync flag']
  #allocation14 [shape = 's32[]', space=sflag, size = 0x4, offset = 0, fixed_abs, tag = 'sflag constant byte address 0x0 - dummy sync flag']
  #allocation15 [shape = 's32[]', space=sflag, size = 0x4, offset = 0, fixed_abs, tag = 'sflag constant byte address 0x0 - dummy sync flag']
  #allocation16 [shape = 's32[]', space=sflag, size = 0x4, offset = 0, fixed_abs, tag = 'sflag constant byte address 0x0 - dummy sync flag']
  #allocation17 [shape = 's32[]', space=sflag, size = 0x4, offset = 0, fixed_abs, tag = 'sflag constant byte address 0x0 - dummy sync flag']
  #allocation18 [shape = 's32[]', space=sflag, size = 0x4, offset = 0, fixed_abs, tag = 'sflag constant byte address 0x0 - dummy sync flag']
  %s0 = inlined_call_operand.vmem [shape: s32[8], index: 0, kind: input, shape index: {}]
  %s1 = inlined_call_operand.vmem [shape: f32[512,64], index: 1, kind: input, shape index: {}]
  %s2 = inlined_call_operand.vmem [shape: f32[64,512], index: 2, kind: input, shape index: {}]
  %s3 = inlined_call_operand.vmem [shape: f32[1,512], index: 3, kind: input, shape index: {}]
  %s4 = inlined_call_operand.hbm [shape: f32[8,512], index: 4, kind: output, shape index: {0}]
  %s5 = inlined_call_operand.hbm [shape: f32[8,64], index: 5, kind: output, shape index: {1}]
  %6 = xla_tuple %s4, %s5
  %s7 = sld [smem:[#allocation0]]
  $region331: #{tpu_custom_call.1} parent=0
    _
  %s9 = ssub.s32 1, %s7
  %s10 = scalar_select 0, %s9, %s7
  %s11 = sshll.u32 %s0, 4
  %s12 = int_to_ptr.vmem [resolvable:$true] %s11
  %14 = dma.vmem_to_smem %s12, 16, [#allocation5], [#allocation4]
  %15 = dma.done [#allocation4], 16
  %16 = sfence
  $region1: #{tpu_custom_call.1} parent=0
    #allocation6 [shape = 'u8[65536]{0}', space=vmem, size = 0x10000, scoped, tag = 'input window, operand 2']
    #allocation7 [shape = 'u8[8192]{0}', space=vmem, size = 0x2000, scoped, tag = 'output window, operand 0']
    #allocation8 [shape = 's32[2]{0}', space=sflag, size = 0x8, scoped, tag = 'scoped memory for tpu_custom_call.1']
    #allocation9 [shape = 'u8[4096]{0}', space=vmem, size = 0x1000, scoped, tag = 'output window, operand 1, single buffered']
    #allocation10 [shape = 's32[1]{0}', space=sflag, size = 0x4, scoped, tag = 'scoped memory for tpu_custom_call.1']
    %17 = vsyncpa [#allocation8], 0
    %s18 = scalar_lea.sflag [#allocation8], 1
    %19 = vsyncpa %s18, 0
    %20 = vsyncpa [#allocation10], 0
    loop: start=0, step=1, limit=6
    $region2: #{tpu_custom_call.1} parent=1 // loop_pre_header
      _
    $region3: #{tpu_custom_call.1} parent=1 // loop_header
      %s22 = sphi 0, %s26
      %p23 = scmp.ge.s32.totalorder %s22, 6
      %s32 = sphi 0, %s34
      %s35 = sphi 0, %s32
      %s36 = sphi 0, %s35
      %s52 = sphi 0, %s36
      %s58 = sphi 0, %s60
      %s61 = sphi 0, %s58
      %s62 = sphi 0, %s61
      %s78 = sphi 0, %s62
      %s84 = sphi 0, %s86
      %s87 = sphi 0, %s84
      %s88 = sphi 0, %s87
      %s104 = sphi 0, %s88
      %s108 = sphi 0, %s108
      %s110 = sphi 0, %s108
      %s111 = sphi 0, %s110
      %s125 = sphi 0, %s111
    $region4: #{tpu_custom_call.1} parent=1 // loop_header_branch
      %25 = sbr.rel (%p23) target = $region8
    $region5: #{tpu_custom_call.1} parent=1 // loop_body
      %s27 = ssub.s32 %s22, 1
      %s28 = ssub.s32 %s22, 2
      %s29 = sadd.s32 %s22, 1
      %s30 = ssub.s32 %s22, %s29
      %p31 = scmp.eq.s32.totalorder %s30, 0
      %s33 = sadd.s32 %s32, 1
      %s34 = scalar_select %p31, %s32, %s33
      %p37 = pneg %p31
      %p38 = scmp.eq.s32.totalorder %s22, 3
      %p39 = por %p37, %p38
      %p40 = scmp.ne.s32.totalorder %s32, %s35
      %p41 = scmp.eq.s32.totalorder %s22, 0
      %p42 = por %p40, %p41
      %p43 = scmp.ne.s32.totalorder %s32, %s35
      %p44 = scmp.eq.s32.totalorder %s27, 3
      %p45 = por %p43, %p44
      %p46 = scmp.ne.s32.totalorder %s35, %s36
      %p47 = scmp.eq.s32.totalorder %s27, 0
      %p48 = por %p46, %p47
      %p49 = scmp.ne.s32.totalorder %s35, %s36
      %p50 = scmp.eq.s32.totalorder %s28, 3
      %p51 = por %p49, %p50
      %p53 = scmp.ne.s32.totalorder %s36, %s52
      %p54 = scmp.eq.s32.totalorder %s28, 0
      %p55 = por %p53, %p54
      %s56 = ssub.s32 %s22, %s29
      %p57 = scmp.eq.s32.totalorder %s56, 0
      %s59 = sadd.s32 %s58, 1
      %s60 = scalar_select %p57, %s58, %s59
      %p63 = pneg %p57
      %p64 = scmp.eq.s32.totalorder %s22, 3
      %p65 = por %p63, %p64
      %p66 = scmp.ne.s32.totalorder %s58, %s61
      %p67 = scmp.eq.s32.totalorder %s22, 0
      %p68 = por %p66, %p67
      %p69 = scmp.ne.s32.totalorder %s58, %s61
      %p70 = scmp.eq.s32.totalorder %s27, 3
      %p71 = por %p69, %p70
      %p72 = scmp.ne.s32.totalorder %s61, %s62
      %p73 = scmp.eq.s32.totalorder %s27, 0
      %p74 = por %p72, %p73
      %p75 = scmp.ne.s32.totalorder %s61, %s62
      %p76 = scmp.eq.s32.totalorder %s28, 3
      %p77 = por %p75, %p76
      %p79 = scmp.ne.s32.totalorder %s62, %s78
      %p80 = scmp.eq.s32.totalorder %s28, 0
      %p81 = por %p79, %p80
      %s82 = ssub.s32 %s22, %s29
      %p83 = scmp.eq.s32.totalorder %s82, 0
      %s85 = sadd.s32 %s84, 1
      %s86 = scalar_select %p83, %s84, %s85
      %p89 = pneg %p83
      %p90 = scmp.eq.s32.totalorder %s22, 3
      %p91 = por %p89, %p90
      %p92 = scmp.ne.s32.totalorder %s84, %s87
      %p93 = scmp.eq.s32.totalorder %s22, 0
      %p94 = por %p92, %p93
      %p95 = scmp.ne.s32.totalorder %s84, %s87
      %p96 = scmp.eq.s32.totalorder %s27, 3
      %p97 = por %p95, %p96
      %p98 = scmp.ne.s32.totalorder %s87, %s88
      %p99 = scmp.eq.s32.totalorder %s27, 0
      %p100 = por %p98, %p99
      %p101 = scmp.ne.s32.totalorder %s87, %s88
      %p102 = scmp.eq.s32.totalorder %s28, 3
      %p103 = por %p101, %p102
      %p105 = scmp.ne.s32.totalorder %s88, %s104
      %p106 = scmp.eq.s32.totalorder %s28, 0
      %p107 = por %p105, %p106
      %s109 = sadd.s32 %s108, 1
      %p112 = scmp.eq.s32.totalorder %s22, 3
      %p113 = scmp.ne.s32.totalorder %s108, %s110
      %p114 = scmp.eq.s32.totalorder %s22, 0
      %p115 = por %p113, %p114
      %p116 = scmp.ne.s32.totalorder %s108, %s110
      %p117 = scmp.eq.s32.totalorder %s27, 3
      %p118 = por %p116, %p117
      %p119 = scmp.ne.s32.totalorder %s110, %s111
      %p120 = scmp.eq.s32.totalorder %s27, 0
      %p121 = por %p119, %p120
      %p122 = scmp.ne.s32.totalorder %s110, %s111
      %p123 = scmp.eq.s32.totalorder %s28, 3
      %p124 = por %p122, %p123
      %p126 = scmp.ne.s32.totalorder %s111, %s125
      %p127 = scmp.eq.s32.totalorder %s28, 0
      %p128 = por %p126, %p127
      %p129 = scmp.le.s32.totalorder 1, %s22
      %p130 = scmp.lt.s32.totalorder %s22, 5
      %p131 = pnand %p129, %p130
      %p132 = pneg %p131
      // Predicated region
      $region9: #{tpu_custom_call.1} parent=5 // pred_check
        _
      $region10: #{tpu_custom_call.1} parent=5 // pred_check_branch
        %134 = sbr.rel (%p131) target = $region12
      $region11: #{tpu_custom_call.1} parent=5 // pred_region
        %s135 = ssub.s32 %s22, 1
      $region12: #{tpu_custom_call.1} parent=5 // pred_fallthru
        _
      %p136 = scmp.lt.s32.totalorder %s22, 4
      // Predicated region
      $region13: #{tpu_custom_call.1} parent=5 // pred_check
        %p137 = pneg %p136
      $region14: #{tpu_custom_call.1} parent=5 // pred_check_branch
        %139 = sbr.rel (%p137) target = $region16
      $region15: #{tpu_custom_call.1} parent=5 // pred_region
        // Predicated region
        $region17: #{tpu_custom_call.1} parent=15 // pred_check
          %p140 = pneg %p42
        $region18: #{tpu_custom_call.1} parent=15 // pred_check_branch
          %142 = sbr.rel (%p140) target = $region20
        $region19: #{tpu_custom_call.1} parent=15 // pred_region
          %s143 = sand.u32 %s32, 1
          %s144 = sand.u32 %s32, 1
          %s145 = smul.addr %s144, 64
          %s146 = scalar_lea.vmem [#allocation6], %s145
          %s147 = smul.addr %s22, 8
          %s148 = scalar_lea.vmem %s2, %s147
          // Predicated region
          $region21: #{tpu_custom_call.1} parent=19 // pred_check
            _
          $region22: #{tpu_custom_call.1} parent=19 // pred_check_branch
            %150 = sbr.rel (0) target = $region24
          $region23: #{tpu_custom_call.1} parent=19 // pred_region
            // Predicated region
            $region25: #{tpu_custom_call.1} parent=23 // pred_check
              _
            $region26: #{tpu_custom_call.1} parent=23 // pred_check_branch
              %152 = sbr.rel (0) target = $region28
            $region27: #{tpu_custom_call.1} parent=23 // pred_region
              // Predicated region
              $region40: #{tpu_custom_call.1} parent=27 // pred_check
                _
              $region41: #{tpu_custom_call.1} parent=27 // pred_check_branch
                %181 = sbr.rel (0) target = $region43
              $region42: #{tpu_custom_call.1} parent=27 // pred_region
                loop: start=0, step=1, limit=1
                $region44: #{tpu_custom_call.1} parent=42 // loop_pre_header
                  _
                $region45: #{tpu_custom_call.1} parent=42 // loop_header
                  %s183 = sphi 0, %s187
                  %p184 = scmp.ge.s32.totalorder %s183, 1
                  %s188 = sphi %s148, %s148
                  %s189 = sphi %s146, %s146
                $region46: #{tpu_custom_call.1} parent=42 // loop_header_branch
                  %186 = sbr.rel (%p184) target = $region50
                $region47: #{tpu_custom_call.1} parent=42 // loop_body
                  %v190 = vld [vmem:[%s188] sm:$0xff]
                  %191 = vst [vmem:[%s189] sm:$0xff] %v190
                  %v192 = vld [vmem:[%s188 + $0x20] sm:$0xff]
                  %193 = vst [vmem:[%s189 + $0x8] sm:$0xff] %v192
                  %v194 = vld [vmem:[%s188 + $0x40] sm:$0xff]
                  %195 = vst [vmem:[%s189 + $0x10] sm:$0xff] %v194
                  %v196 = vld [vmem:[%s188 + $0x60] sm:$0xff]
                  %197 = vst [vmem:[%s189 + $0x18] sm:$0xff] %v196
                  %v198 = vld [vmem:[%s188 + $0x80] sm:$0xff]
                  %199 = vst [vmem:[%s189 + $0x20] sm:$0xff] %v198
                  %v200 = vld [vmem:[%s188 + $0xa0] sm:$0xff]
                  %201 = vst [vmem:[%s189 + $0x28] sm:$0xff] %v200
                  %v202 = vld [vmem:[%s188 + $0xc0] sm:$0xff]
                  %203 = vst [vmem:[%s189 + $0x30] sm:$0xff] %v202
                  %v204 = vld [vmem:[%s188 + $0xe0] sm:$0xff]
                  %205 = vst [vmem:[%s189 + $0x38] sm:$0xff] %v204
                $region48: #{tpu_custom_call.1} parent=42 // loop_footer
                  %s187 = sadd.s32 1, %s183
                $region49: #{tpu_custom_call.1} parent=42 // loop_footer_branch
                  %182 = sbr.rel target = $region45
                $region50: #{tpu_custom_call.1} parent=42 // loop_exit
                  _
              $region43: #{tpu_custom_call.1} parent=27 // pred_fallthru
                _
              // Predicated region
              $region51: #{tpu_custom_call.1} parent=27 // pred_check
                _
              $region52: #{tpu_custom_call.1} parent=27 // pred_check_branch
                %207 = sbr.rel target = $region54
              $region53: #{tpu_custom_call.1} parent=27 // pred_region
                _
              $region54: #{tpu_custom_call.1} parent=27 // pred_fallthru
                _
            $region28: #{tpu_custom_call.1} parent=23 // pred_fallthru
              _
            // Predicated region
            $region29: #{tpu_custom_call.1} parent=23 // pred_check
              _
            $region30: #{tpu_custom_call.1} parent=23 // pred_check_branch
              %154 = sbr.rel target = $region32
            $region31: #{tpu_custom_call.1} parent=23 // pred_region
              loop: start=0, step=1, limit=1
              $region33: #{tpu_custom_call.1} parent=31 // loop_pre_header
                _
              $region34: #{tpu_custom_call.1} parent=31 // loop_header
                %s157 = sphi 0, %s161
                %p158 = scmp.ge.s32.totalorder %s157, 1
                %s162 = sphi %s148, %s148
                %s163 = sphi %s146, %s146
              $region35: #{tpu_custom_call.1} parent=31 // loop_header_branch
                %160 = sbr.rel (%p158) target = $region39
              $region36: #{tpu_custom_call.1} parent=31 // loop_body
                %v164 = vld [vmem:[%s162] sm:$0xff]
                %165 = vst [vmem:[%s163] sm:$0xff] %v164
                %v166 = vld [vmem:[%s162 + $0x20] sm:$0xff]
                %167 = vst [vmem:[%s163 + $0x8] sm:$0xff] %v166
                %v168 = vld [vmem:[%s162 + $0x40] sm:$0xff]
                %169 = vst [vmem:[%s163 + $0x10] sm:$0xff] %v168
                %v170 = vld [vmem:[%s162 + $0x60] sm:$0xff]
                %171 = vst [vmem:[%s163 + $0x18] sm:$0xff] %v170
                %v172 = vld [vmem:[%s162 + $0x80] sm:$0xff]
                %173 = vst [vmem:[%s163 + $0x20] sm:$0xff] %v172
                %v174 = vld [vmem:[%s162 + $0xa0] sm:$0xff]
                %175 = vst [vmem:[%s163 + $0x28] sm:$0xff] %v174
                %v176 = vld [vmem:[%s162 + $0xc0] sm:$0xff]
                %177 = vst [vmem:[%s163 + $0x30] sm:$0xff] %v176
                %v178 = vld [vmem:[%s162 + $0xe0] sm:$0xff]
                %179 = vst [vmem:[%s163 + $0x38] sm:$0xff] %v178
              $region37: #{tpu_custom_call.1} parent=31 // loop_footer
                %s161 = sadd.s32 1, %s157
              $region38: #{tpu_custom_call.1} parent=31 // loop_footer_branch
                %156 = sbr.rel target = $region34
              $region39: #{tpu_custom_call.1} parent=31 // loop_exit
                _
            $region32: #{tpu_custom_call.1} parent=23 // pred_fallthru
              _
          $region24: #{tpu_custom_call.1} parent=19 // pred_fallthru
            _
          %208 = vnop
        $region20: #{tpu_custom_call.1} parent=15 // pred_fallthru
          _
        // Predicated region
        $region55: #{tpu_custom_call.1} parent=15 // pred_check
          %p209 = pneg %p68
        $region56: #{tpu_custom_call.1} parent=15 // pred_check_branch
          %211 = sbr.rel (%p209) target = $region58
        $region57: #{tpu_custom_call.1} parent=15 // pred_region
          %p212 = scmp.lt.s32.totalorder %s22, 3
          %s213 = scalar_select %p212, %s22, 3
          %s214 = scalar_lea.vmem %s3, %s213
        $region58: #{tpu_custom_call.1} parent=15 // pred_fallthru
          _
      $region16: #{tpu_custom_call.1} parent=5 // pred_fallthru
        _
      %p215 = scmp.le.s32.totalorder 1, %s22
      %p216 = scmp.lt.s32.totalorder %s22, 5
      %p217 = pnand %p215, %p216
      %p218 = pneg %p217
      // Predicated region
      $region59: #{tpu_custom_call.1} parent=5 // pred_check
        _
      $region60: #{tpu_custom_call.1} parent=5 // pred_check_branch
        %220 = sbr.rel (%p217) target = $region62
      $region61: #{tpu_custom_call.1} parent=5 // pred_region
        %s221 = ssub.s32 %s22, 1
        %s222 = sand.u32 %s35, 1
        %s223 = sand.u32 %s35, 1
        %s224 = smul.addr %s223, 64
        %s225 = scalar_lea.vmem [#allocation6], %s224
        // Predicated region
        $region63: #{tpu_custom_call.1} parent=61 // pred_check
          %p226 = pneg %p48
        $region64: #{tpu_custom_call.1} parent=61 // pred_check_branch
          %228 = sbr.rel (%p226) target = $region66
        $region65: #{tpu_custom_call.1} parent=61 // pred_region
          _
        $region66: #{tpu_custom_call.1} parent=61 // pred_fallthru
          _
        %s229 = sand.u32 %s35, 1
        %s230 = sand.u32 %s35, 1
        %s231 = smul.addr %s230, 64
        %s232 = scalar_lea.vmem [#allocation6], %s231
        %p233 = pneg %p48
        %p234 = pneg %p45
        %p235 = scmp.lt.s32.totalorder %s27, 3
        %s236 = scalar_select %p235, %s27, 3
        %s237 = scalar_lea.vmem %s3, %s236
        %p238 = pneg %p74
        %p239 = pneg %p71
        %p240 = pneg %p100
        %p241 = pneg %p97
        %s242 = sand.u32 %s87, 1
        %s243 = scalar_lea.sflag [#allocation8], %s242
        %s244 = sand.u32 %s87, 1
        %s245 = smul.addr %s244, 8
        %s246 = scalar_lea.vmem [#allocation7], %s245
        %p247 = pneg %p121
        %p248 = pneg %p118
        %p249 = scmp.lt.s32.totalorder %s27, 3
        %s250 = scalar_select %p249, %s27, 3
        %s251 = scalar_lea.vmem %s3, %s250
        %p252 = scmp.eq.s32.totalorder %s27, 0
        // Predicated region
        $region67: #{tpu_custom_call.1} parent=61 // pred_check
          %p253 = pneg %p252
        $region68: #{tpu_custom_call.1} parent=61 // pred_check_branch
          %255 = sbr.rel (%p253) target = $region70
        $region69: #{tpu_custom_call.1} parent=61 // pred_region
          %s256 = sld [smem:[#allocation5]]
          %s257 = scalar_lea.vmem %s1, %s256
          %p259 = scmp.lt.u32.totalorder 1, 8
          %p260 = pneg %p259
          // Predicated region
          $region71: #{tpu_custom_call.1} parent=69 // pred_check
            _
          $region72: #{tpu_custom_call.1} parent=69 // pred_check_branch
            %262 = sbr.rel (%p259) target = $region74
          $region73: #{tpu_custom_call.1} parent=69 // pred_region
            %s277 = sand.u32 1, 7
            %p278 = scmp.eq.s32.totalorder %s277, 0
            %p279 = pneg %p278
            // Predicated region
            $region86: #{tpu_custom_call.1} parent=73 // pred_check
              _
            $region87: #{tpu_custom_call.1} parent=73 // pred_check_branch
              %281 = sbr.rel (%p278) target = $region89
            $region88: #{tpu_custom_call.1} parent=73 // pred_region
              %s282 = sand.u32 1, 7
              %s283 = ssub.s32 1, %s282
              %s284 = scalar_lea.vmem %s257, %s283
              %s285 = ssub.s32 1, %s282
              %s286 = scalar_lea.vmem [#allocation2], %s285
              %s287 = sshllo.u32 0, %s282
              loop: start=0, step=1, limit=1
              $region90: #{tpu_custom_call.1} parent=88 // loop_pre_header
                _
              $region91: #{tpu_custom_call.1} parent=88 // loop_header
                %s289 = sphi 0, %s293
                %p290 = scmp.ge.s32.totalorder %s289, 1
                %s294 = sphi %s284, %s284
                %s295 = sphi %s286, %s286
              $region92: #{tpu_custom_call.1} parent=88 // loop_header_branch
                %292 = sbr.rel (%p290) target = $region96
              $region93: #{tpu_custom_call.1} parent=88 // loop_body
                %v296 = vld [vmem:[%s294] sm:%s287]
                %297 = vst [vmem:[%s295] sm:%s287] %v296
              $region94: #{tpu_custom_call.1} parent=88 // loop_footer
                %s293 = sadd.s32 1, %s289
              $region95: #{tpu_custom_call.1} parent=88 // loop_footer_branch
                %288 = sbr.rel target = $region91
              $region96: #{tpu_custom_call.1} parent=88 // loop_exit
                _
            $region89: #{tpu_custom_call.1} parent=73 // pred_fallthru
              _
          $region74: #{tpu_custom_call.1} parent=69 // pred_fallthru
            _
          // Predicated region
          $region75: #{tpu_custom_call.1} parent=69 // pred_check
            %p263 = pneg %p259
          $region76: #{tpu_custom_call.1} parent=69 // pred_check_branch
            %265 = sbr.rel (%p263) target = $region78
          $region77: #{tpu_custom_call.1} parent=69 // pred_region
            %s266 = sshllo.u32 0, 1
            loop: start=0, step=1, limit=1
            $region79: #{tpu_custom_call.1} parent=77 // loop_pre_header
              _
            $region80: #{tpu_custom_call.1} parent=77 // loop_header
              %s268 = sphi 0, %s272
              %p269 = scmp.ge.s32.totalorder %s268, 1
              %s273 = sphi %s257, %s257
              %s274 = sphi [#allocation2], [#allocation2]
            $region81: #{tpu_custom_call.1} parent=77 // loop_header_branch
              %271 = sbr.rel (%p269) target = $region85
            $region82: #{tpu_custom_call.1} parent=77 // loop_body
              %v275 = vld [vmem:[%s273] sm:%s266]
              %276 = vst [vmem:[%s274] sm:%s266] %v275
            $region83: #{tpu_custom_call.1} parent=77 // loop_footer
              %s272 = sadd.s32 1, %s268
            $region84: #{tpu_custom_call.1} parent=77 // loop_footer_branch
              %267 = sbr.rel target = $region80
            $region85: #{tpu_custom_call.1} parent=77 // loop_exit
              _
          $region78: #{tpu_custom_call.1} parent=69 // pred_fallthru
            _
          // Predicated region
          $region97: #{tpu_custom_call.1} parent=69 // pred_check
            _
          $region98: #{tpu_custom_call.1} parent=69 // pred_check_branch
            %300 = sbr.rel (0) target = $region100
          $region99: #{tpu_custom_call.1} parent=69 // pred_region
            %301 = vsyncadd [#allocation3], 16
          $region100: #{tpu_custom_call.1} parent=69 // pred_fallthru
            _
          %s302 = sld [smem:[#allocation5 + $0x1]]
          %s303 = scalar_lea.vmem %s1, %s302
          %s304 = scalar_lea.vmem [#allocation2], 1
          %s305 = scalar_lea.sflag [#allocation3], 1
          %p307 = scmp.lt.u32.totalorder 1, 8
          %p308 = pneg %p307
          // Predicated region
          $region101: #{tpu_custom_call.1} parent=69 // pred_check
            _
          $region102: #{tpu_custom_call.1} parent=69 // pred_check_branch
            %310 = sbr.rel (%p307) target = $region104
          $region103: #{tpu_custom_call.1} parent=69 // pred_region
            %s325 = sand.u32 1, 7
            %p326 = scmp.eq.s32.totalorder %s325, 0
            %p327 = pneg %p326
            // Predicated region
            $region116: #{tpu_custom_call.1} parent=103 // pred_check
              _
            $region117: #{tpu_custom_call.1} parent=103 // pred_check_branch
              %329 = sbr.rel (%p326) target = $region119
            $region118: #{tpu_custom_call.1} parent=103 // pred_region
              %s330 = sand.u32 1, 7
              %s331 = ssub.s32 1, %s330
              %s332 = scalar_lea.vmem %s303, %s331
              %s333 = ssub.s32 1, %s330
              %s334 = scalar_lea.vmem %s304, %s333 [#allocation2]
              %s335 = sshllo.u32 0, %s330
              loop: start=0, step=1, limit=1
              $region120: #{tpu_custom_call.1} parent=118 // loop_pre_header
                _
              $region121: #{tpu_custom_call.1} parent=118 // loop_header
                %s337 = sphi 0, %s341
                %p338 = scmp.ge.s32.totalorder %s337, 1
                %s342 = sphi %s332, %s332
                %s343 = sphi %s334, %s334
              $region122: #{tpu_custom_call.1} parent=118 // loop_header_branch
                %340 = sbr.rel (%p338) target = $region126
              $region123: #{tpu_custom_call.1} parent=118 // loop_body
                %v344 = vld [vmem:[%s342] sm:%s335]
                %345 = vst [vmem:[%s343] sm:%s335] %v344
              $region124: #{tpu_custom_call.1} parent=118 // loop_footer
                %s341 = sadd.s32 1, %s337
              $region125: #{tpu_custom_call.1} parent=118 // loop_footer_branch
                %336 = sbr.rel target = $region121
              $region126: #{tpu_custom_call.1} parent=118 // loop_exit
                _
            $region119: #{tpu_custom_call.1} parent=103 // pred_fallthru
              _
          $region104: #{tpu_custom_call.1} parent=69 // pred_fallthru
            _
          // Predicated region
          $region105: #{tpu_custom_call.1} parent=69 // pred_check
            %p311 = pneg %p307
          $region106: #{tpu_custom_call.1} parent=69 // pred_check_branch
            %313 = sbr.rel (%p311) target = $region108
          $region107: #{tpu_custom_call.1} parent=69 // pred_region
            %s314 = sshllo.u32 0, 1
            loop: start=0, step=1, limit=1
            $region109: #{tpu_custom_call.1} parent=107 // loop_pre_header
              _
            $region110: #{tpu_custom_call.1} parent=107 // loop_header
              %s316 = sphi 0, %s320
              %p317 = scmp.ge.s32.totalorder %s316, 1
              %s321 = sphi %s303, %s303
              %s322 = sphi %s304, %s304
            $region111: #{tpu_custom_call.1} parent=107 // loop_header_branch
              %319 = sbr.rel (%p317) target = $region115
            $region112: #{tpu_custom_call.1} parent=107 // loop_body
              %v323 = vld [vmem:[%s321] sm:%s314]
              %324 = vst [vmem:[%s322] sm:%s314] %v323
            $region113: #{tpu_custom_call.1} parent=107 // loop_footer
              %s320 = sadd.s32 1, %s316
            $region114: #{tpu_custom_call.1} parent=107 // loop_footer_branch
              %315 = sbr.rel target = $region110
            $region115: #{tpu_custom_call.1} parent=107 // loop_exit
              _
          $region108: #{tpu_custom_call.1} parent=69 // pred_fallthru
            _
          // Predicated region
          $region127: #{tpu_custom_call.1} parent=69 // pred_check
            _
          $region128: #{tpu_custom_call.1} parent=69 // pred_check_branch
            %348 = sbr.rel (0) target = $region130
          $region129: #{tpu_custom_call.1} parent=69 // pred_region
            %349 = vsyncadd %s305, 16
          $region130: #{tpu_custom_call.1} parent=69 // pred_fallthru
            _
          %s350 = sld [smem:[#allocation5 + $0x2]]
          %s351 = scalar_lea.vmem %s1, %s350
          %s352 = scalar_lea.vmem [#allocation2], 2
          %s353 = scalar_lea.sflag [#allocation3], 2
          %p355 = scmp.lt.u32.totalorder 1, 8
          %p356 = pneg %p355
          // Predicated region
          $region131: #{tpu_custom_call.1} parent=69 // pred_check
            _
          $region132: #{tpu_custom_call.1} parent=69 // pred_check_branch
            %358 = sbr.rel (%p355) target = $region134
          $region133: #{tpu_custom_call.1} parent=69 // pred_region
            %s373 = sand.u32 1, 7
            %p374 = scmp.eq.s32.totalorder %s373, 0
            %p375 = pneg %p374
            // Predicated region
            $region146: #{tpu_custom_call.1} parent=133 // pred_check
              _
            $region147: #{tpu_custom_call.1} parent=133 // pred_check_branch
              %377 = sbr.rel (%p374) target = $region149
            $region148: #{tpu_custom_call.1} parent=133 // pred_region
              %s378 = sand.u32 1, 7
              %s379 = ssub.s32 1, %s378
              %s380 = scalar_lea.vmem %s351, %s379
              %s381 = ssub.s32 1, %s378
              %s382 = scalar_lea.vmem %s352, %s381 [#allocation2]
              %s383 = sshllo.u32 0, %s378
              loop: start=0, step=1, limit=1
              $region150: #{tpu_custom_call.1} parent=148 // loop_pre_header
                _
              $region151: #{tpu_custom_call.1} parent=148 // loop_header
                %s385 = sphi 0, %s389
                %p386 = scmp.ge.s32.totalorder %s385, 1
                %s390 = sphi %s380, %s380
                %s391 = sphi %s382, %s382
              $region152: #{tpu_custom_call.1} parent=148 // loop_header_branch
                %388 = sbr.rel (%p386) target = $region156
              $region153: #{tpu_custom_call.1} parent=148 // loop_body
                %v392 = vld [vmem:[%s390] sm:%s383]
                %393 = vst [vmem:[%s391] sm:%s383] %v392
              $region154: #{tpu_custom_call.1} parent=148 // loop_footer
                %s389 = sadd.s32 1, %s385
              $region155: #{tpu_custom_call.1} parent=148 // loop_footer_branch
                %384 = sbr.rel target = $region151
              $region156: #{tpu_custom_call.1} parent=148 // loop_exit
                _
            $region149: #{tpu_custom_call.1} parent=133 // pred_fallthru
              _
          $region134: #{tpu_custom_call.1} parent=69 // pred_fallthru
            _
          // Predicated region
          $region135: #{tpu_custom_call.1} parent=69 // pred_check
            %p359 = pneg %p355
          $region136: #{tpu_custom_call.1} parent=69 // pred_check_branch
            %361 = sbr.rel (%p359) target = $region138
          $region137: #{tpu_custom_call.1} parent=69 // pred_region
            %s362 = sshllo.u32 0, 1
            loop: start=0, step=1, limit=1
            $region139: #{tpu_custom_call.1} parent=137 // loop_pre_header
              _
            $region140: #{tpu_custom_call.1} parent=137 // loop_header
              %s364 = sphi 0, %s368
              %p365 = scmp.ge.s32.totalorder %s364, 1
              %s369 = sphi %s351, %s351
              %s370 = sphi %s352, %s352
            $region141: #{tpu_custom_call.1} parent=137 // loop_header_branch
              %367 = sbr.rel (%p365) target = $region145
            $region142: #{tpu_custom_call.1} parent=137 // loop_body
              %v371 = vld [vmem:[%s369] sm:%s362]
              %372 = vst [vmem:[%s370] sm:%s362] %v371
            $region143: #{tpu_custom_call.1} parent=137 // loop_footer
              %s368 = sadd.s32 1, %s364
            $region144: #{tpu_custom_call.1} parent=137 // loop_footer_branch
              %363 = sbr.rel target = $region140
            $region145: #{tpu_custom_call.1} parent=137 // loop_exit
              _
          $region138: #{tpu_custom_call.1} parent=69 // pred_fallthru
            _
          // Predicated region
          $region157: #{tpu_custom_call.1} parent=69 // pred_check
            _
          $region158: #{tpu_custom_call.1} parent=69 // pred_check_branch
            %396 = sbr.rel (0) target = $region160
          $region159: #{tpu_custom_call.1} parent=69 // pred_region
            %397 = vsyncadd %s353, 16
          $region160: #{tpu_custom_call.1} parent=69 // pred_fallthru
            _
          %s398 = sld [smem:[#allocation5 + $0x3]]
          %s399 = scalar_lea.vmem %s1, %s398
          %s400 = scalar_lea.vmem [#allocation2], 3
          %s401 = scalar_lea.sflag [#allocation3], 3
          %p403 = scmp.lt.u32.totalorder 1, 8
          %p404 = pneg %p403
          // Predicated region
          $region161: #{tpu_custom_call.1} parent=69 // pred_check
            _
          $region162: #{tpu_custom_call.1} parent=69 // pred_check_branch
            %406 = sbr.rel (%p403) target = $region164
          $region163: #{tpu_custom_call.1} parent=69 // pred_region
            %s421 = sand.u32 1, 7
            %p422 = scmp.eq.s32.totalorder %s421, 0
            %p423 = pneg %p422
            // Predicated region
            $region176: #{tpu_custom_call.1} parent=163 // pred_check
              _
            $region177: #{tpu_custom_call.1} parent=163 // pred_check_branch
              %425 = sbr.rel (%p422) target = $region179
            $region178: #{tpu_custom_call.1} parent=163 // pred_region
              %s426 = sand.u32 1, 7
              %s427 = ssub.s32 1, %s426
              %s428 = scalar_lea.vmem %s399, %s427
              %s429 = ssub.s32 1, %s426
              %s430 = scalar_lea.vmem %s400, %s429 [#allocation2]
              %s431 = sshllo.u32 0, %s426
              loop: start=0, step=1, limit=1
              $region180: #{tpu_custom_call.1} parent=178 // loop_pre_header
                _
              $region181: #{tpu_custom_call.1} parent=178 // loop_header
                %s433 = sphi 0, %s437
                %p434 = scmp.ge.s32.totalorder %s433, 1
                %s438 = sphi %s428, %s428
                %s439 = sphi %s430, %s430
              $region182: #{tpu_custom_call.1} parent=178 // loop_header_branch
                %436 = sbr.rel (%p434) target = $region186
              $region183: #{tpu_custom_call.1} parent=178 // loop_body
                %v440 = vld [vmem:[%s438] sm:%s431]
                %441 = vst [vmem:[%s439] sm:%s431] %v440
              $region184: #{tpu_custom_call.1} parent=178 // loop_footer
                %s437 = sadd.s32 1, %s433
              $region185: #{tpu_custom_call.1} parent=178 // loop_footer_branch
                %432 = sbr.rel target = $region181
              $region186: #{tpu_custom_call.1} parent=178 // loop_exit
                _
            $region179: #{tpu_custom_call.1} parent=163 // pred_fallthru
              _
          $region164: #{tpu_custom_call.1} parent=69 // pred_fallthru
            _
          // Predicated region
          $region165: #{tpu_custom_call.1} parent=69 // pred_check
            %p407 = pneg %p403
          $region166: #{tpu_custom_call.1} parent=69 // pred_check_branch
            %409 = sbr.rel (%p407) target = $region168
          $region167: #{tpu_custom_call.1} parent=69 // pred_region
            %s410 = sshllo.u32 0, 1
            loop: start=0, step=1, limit=1
            $region169: #{tpu_custom_call.1} parent=167 // loop_pre_header
              _
            $region170: #{tpu_custom_call.1} parent=167 // loop_header
              %s412 = sphi 0, %s416
              %p413 = scmp.ge.s32.totalorder %s412, 1
              %s417 = sphi %s399, %s399
              %s418 = sphi %s400, %s400
            $region171: #{tpu_custom_call.1} parent=167 // loop_header_branch
              %415 = sbr.rel (%p413) target = $region175
            $region172: #{tpu_custom_call.1} parent=167 // loop_body
              %v419 = vld [vmem:[%s417] sm:%s410]
              %420 = vst [vmem:[%s418] sm:%s410] %v419
            $region173: #{tpu_custom_call.1} parent=167 // loop_footer
              %s416 = sadd.s32 1, %s412
            $region174: #{tpu_custom_call.1} parent=167 // loop_footer_branch
              %411 = sbr.rel target = $region170
            $region175: #{tpu_custom_call.1} parent=167 // loop_exit
              _
          $region168: #{tpu_custom_call.1} parent=69 // pred_fallthru
            _
          // Predicated region
          $region187: #{tpu_custom_call.1} parent=69 // pred_check
            _
          $region188: #{tpu_custom_call.1} parent=69 // pred_check_branch
            %444 = sbr.rel (0) target = $region190
          $region189: #{tpu_custom_call.1} parent=69 // pred_region
            %445 = vsyncadd %s401, 16
          $region190: #{tpu_custom_call.1} parent=69 // pred_fallthru
            _
          %s446 = sld [smem:[#allocation5 + $0x4]]
          %s447 = scalar_lea.vmem %s1, %s446
          %s448 = scalar_lea.vmem [#allocation2], 4
          %s449 = scalar_lea.sflag [#allocation3], 4
          %p451 = scmp.lt.u32.totalorder 1, 8
          %p452 = pneg %p451
          // Predicated region
          $region191: #{tpu_custom_call.1} parent=69 // pred_check
            _
          $region192: #{tpu_custom_call.1} parent=69 // pred_check_branch
            %454 = sbr.rel (%p451) target = $region194
          $region193: #{tpu_custom_call.1} parent=69 // pred_region
            %s469 = sand.u32 1, 7
            %p470 = scmp.eq.s32.totalorder %s469, 0
            %p471 = pneg %p470
            // Predicated region
            $region206: #{tpu_custom_call.1} parent=193 // pred_check
              _
            $region207: #{tpu_custom_call.1} parent=193 // pred_check_branch
              %473 = sbr.rel (%p470) target = $region209
            $region208: #{tpu_custom_call.1} parent=193 // pred_region
              %s474 = sand.u32 1, 7
              %s475 = ssub.s32 1, %s474
              %s476 = scalar_lea.vmem %s447, %s475
              %s477 = ssub.s32 1, %s474
              %s478 = scalar_lea.vmem %s448, %s477 [#allocation2]
              %s479 = sshllo.u32 0, %s474
              loop: start=0, step=1, limit=1
              $region210: #{tpu_custom_call.1} parent=208 // loop_pre_header
                _
              $region211: #{tpu_custom_call.1} parent=208 // loop_header
                %s481 = sphi 0, %s485
                %p482 = scmp.ge.s32.totalorder %s481, 1
                %s486 = sphi %s476, %s476
                %s487 = sphi %s478, %s478
              $region212: #{tpu_custom_call.1} parent=208 // loop_header_branch
                %484 = sbr.rel (%p482) target = $region216
              $region213: #{tpu_custom_call.1} parent=208 // loop_body
                %v488 = vld [vmem:[%s486] sm:%s479]
                %489 = vst [vmem:[%s487] sm:%s479] %v488
              $region214: #{tpu_custom_call.1} parent=208 // loop_footer
                %s485 = sadd.s32 1, %s481
              $region215: #{tpu_custom_call.1} parent=208 // loop_footer_branch
                %480 = sbr.rel target = $region211
              $region216: #{tpu_custom_call.1} parent=208 // loop_exit
                _
            $region209: #{tpu_custom_call.1} parent=193 // pred_fallthru
              _
          $region194: #{tpu_custom_call.1} parent=69 // pred_fallthru
            _
          // Predicated region
          $region195: #{tpu_custom_call.1} parent=69 // pred_check
            %p455 = pneg %p451
          $region196: #{tpu_custom_call.1} parent=69 // pred_check_branch
            %457 = sbr.rel (%p455) target = $region198
          $region197: #{tpu_custom_call.1} parent=69 // pred_region
            %s458 = sshllo.u32 0, 1
            loop: start=0, step=1, limit=1
            $region199: #{tpu_custom_call.1} parent=197 // loop_pre_header
              _
            $region200: #{tpu_custom_call.1} parent=197 // loop_header
              %s460 = sphi 0, %s464
              %p461 = scmp.ge.s32.totalorder %s460, 1
              %s465 = sphi %s447, %s447
              %s466 = sphi %s448, %s448
            $region201: #{tpu_custom_call.1} parent=197 // loop_header_branch
              %463 = sbr.rel (%p461) target = $region205
            $region202: #{tpu_custom_call.1} parent=197 // loop_body
              %v467 = vld [vmem:[%s465] sm:%s458]
              %468 = vst [vmem:[%s466] sm:%s458] %v467
            $region203: #{tpu_custom_call.1} parent=197 // loop_footer
              %s464 = sadd.s32 1, %s460
            $region204: #{tpu_custom_call.1} parent=197 // loop_footer_branch
              %459 = sbr.rel target = $region200
            $region205: #{tpu_custom_call.1} parent=197 // loop_exit
              _
          $region198: #{tpu_custom_call.1} parent=69 // pred_fallthru
            _
          // Predicated region
          $region217: #{tpu_custom_call.1} parent=69 // pred_check
            _
          $region218: #{tpu_custom_call.1} parent=69 // pred_check_branch
            %492 = sbr.rel (0) target = $region220
          $region219: #{tpu_custom_call.1} parent=69 // pred_region
            %493 = vsyncadd %s449, 16
          $region220: #{tpu_custom_call.1} parent=69 // pred_fallthru
            _
          %s494 = sld [smem:[#allocation5 + $0x5]]
          %s495 = scalar_lea.vmem %s1, %s494
          %s496 = scalar_lea.vmem [#allocation2], 5
          %s497 = scalar_lea.sflag [#allocation3], 5
          %p499 = scmp.lt.u32.totalorder 1, 8
          %p500 = pneg %p499
          // Predicated region
          $region221: #{tpu_custom_call.1} parent=69 // pred_check
            _
          $region222: #{tpu_custom_call.1} parent=69 // pred_check_branch
            %502 = sbr.rel (%p499) target = $region224
          $region223: #{tpu_custom_call.1} parent=69 // pred_region
            %s517 = sand.u32 1, 7
            %p518 = scmp.eq.s32.totalorder %s517, 0
            %p519 = pneg %p518
            // Predicated region
            $region236: #{tpu_custom_call.1} parent=223 // pred_check
              _
            $region237: #{tpu_custom_call.1} parent=223 // pred_check_branch
              %521 = sbr.rel (%p518) target = $region239
            $region238: #{tpu_custom_call.1} parent=223 // pred_region
              %s522 = sand.u32 1, 7
              %s523 = ssub.s32 1, %s522
              %s524 = scalar_lea.vmem %s495, %s523
              %s525 = ssub.s32 1, %s522
              %s526 = scalar_lea.vmem %s496, %s525 [#allocation2]
              %s527 = sshllo.u32 0, %s522
              loop: start=0, step=1, limit=1
              $region240: #{tpu_custom_call.1} parent=238 // loop_pre_header
                _
              $region241: #{tpu_custom_call.1} parent=238 // loop_header
                %s529 = sphi 0, %s533
                %p530 = scmp.ge.s32.totalorder %s529, 1
                %s534 = sphi %s524, %s524
                %s535 = sphi %s526, %s526
              $region242: #{tpu_custom_call.1} parent=238 // loop_header_branch
                %532 = sbr.rel (%p530) target = $region246
              $region243: #{tpu_custom_call.1} parent=238 // loop_body
                %v536 = vld [vmem:[%s534] sm:%s527]
                %537 = vst [vmem:[%s535] sm:%s527] %v536
              $region244: #{tpu_custom_call.1} parent=238 // loop_footer
                %s533 = sadd.s32 1, %s529
              $region245: #{tpu_custom_call.1} parent=238 // loop_footer_branch
                %528 = sbr.rel target = $region241
              $region246: #{tpu_custom_call.1} parent=238 // loop_exit
                _
            $region239: #{tpu_custom_call.1} parent=223 // pred_fallthru
              _
          $region224: #{tpu_custom_call.1} parent=69 // pred_fallthru
            _
          // Predicated region
          $region225: #{tpu_custom_call.1} parent=69 // pred_check
            %p503 = pneg %p499
          $region226: #{tpu_custom_call.1} parent=69 // pred_check_branch
            %505 = sbr.rel (%p503) target = $region228
          $region227: #{tpu_custom_call.1} parent=69 // pred_region
            %s506 = sshllo.u32 0, 1
            loop: start=0, step=1, limit=1
            $region229: #{tpu_custom_call.1} parent=227 // loop_pre_header
              _
            $region230: #{tpu_custom_call.1} parent=227 // loop_header
              %s508 = sphi 0, %s512
              %p509 = scmp.ge.s32.totalorder %s508, 1
              %s513 = sphi %s495, %s495
              %s514 = sphi %s496, %s496
            $region231: #{tpu_custom_call.1} parent=227 // loop_header_branch
              %511 = sbr.rel (%p509) target = $region235
            $region232: #{tpu_custom_call.1} parent=227 // loop_body
              %v515 = vld [vmem:[%s513] sm:%s506]
              %516 = vst [vmem:[%s514] sm:%s506] %v515
            $region233: #{tpu_custom_call.1} parent=227 // loop_footer
              %s512 = sadd.s32 1, %s508
            $region234: #{tpu_custom_call.1} parent=227 // loop_footer_branch
              %507 = sbr.rel target = $region230
            $region235: #{tpu_custom_call.1} parent=227 // loop_exit
              _
          $region228: #{tpu_custom_call.1} parent=69 // pred_fallthru
            _
          // Predicated region
          $region247: #{tpu_custom_call.1} parent=69 // pred_check
            _
          $region248: #{tpu_custom_call.1} parent=69 // pred_check_branch
            %540 = sbr.rel (0) target = $region250
          $region249: #{tpu_custom_call.1} parent=69 // pred_region
            %541 = vsyncadd %s497, 16
          $region250: #{tpu_custom_call.1} parent=69 // pred_fallthru
            _
          %s542 = sld [smem:[#allocation5 + $0x6]]
          %s543 = scalar_lea.vmem %s1, %s542
          %s544 = scalar_lea.vmem [#allocation2], 6
          %s545 = scalar_lea.sflag [#allocation3], 6
          %p547 = scmp.lt.u32.totalorder 1, 8
          %p548 = pneg %p547
          // Predicated region
          $region251: #{tpu_custom_call.1} parent=69 // pred_check
            _
          $region252: #{tpu_custom_call.1} parent=69 // pred_check_branch
            %550 = sbr.rel (%p547) target = $region254
          $region253: #{tpu_custom_call.1} parent=69 // pred_region
            %s565 = sand.u32 1, 7
            %p566 = scmp.eq.s32.totalorder %s565, 0
            %p567 = pneg %p566
            // Predicated region
            $region266: #{tpu_custom_call.1} parent=253 // pred_check
              _
            $region267: #{tpu_custom_call.1} parent=253 // pred_check_branch
              %569 = sbr.rel (%p566) target = $region269
            $region268: #{tpu_custom_call.1} parent=253 // pred_region
              %s570 = sand.u32 1, 7
              %s571 = ssub.s32 1, %s570
              %s572 = scalar_lea.vmem %s543, %s571
              %s573 = ssub.s32 1, %s570
              %s574 = scalar_lea.vmem %s544, %s573 [#allocation2]
              %s575 = sshllo.u32 0, %s570
              loop: start=0, step=1, limit=1
              $region270: #{tpu_custom_call.1} parent=268 // loop_pre_header
                _
              $region271: #{tpu_custom_call.1} parent=268 // loop_header
                %s577 = sphi 0, %s581
                %p578 = scmp.ge.s32.totalorder %s577, 1
                %s582 = sphi %s572, %s572
                %s583 = sphi %s574, %s574
              $region272: #{tpu_custom_call.1} parent=268 // loop_header_branch
                %580 = sbr.rel (%p578) target = $region276
              $region273: #{tpu_custom_call.1} parent=268 // loop_body
                %v584 = vld [vmem:[%s582] sm:%s575]
                %585 = vst [vmem:[%s583] sm:%s575] %v584
              $region274: #{tpu_custom_call.1} parent=268 // loop_footer
                %s581 = sadd.s32 1, %s577
              $region275: #{tpu_custom_call.1} parent=268 // loop_footer_branch
                %576 = sbr.rel target = $region271
              $region276: #{tpu_custom_call.1} parent=268 // loop_exit
                _
            $region269: #{tpu_custom_call.1} parent=253 // pred_fallthru
              _
          $region254: #{tpu_custom_call.1} parent=69 // pred_fallthru
            _
          // Predicated region
          $region255: #{tpu_custom_call.1} parent=69 // pred_check
            %p551 = pneg %p547
          $region256: #{tpu_custom_call.1} parent=69 // pred_check_branch
            %553 = sbr.rel (%p551) target = $region258
          $region257: #{tpu_custom_call.1} parent=69 // pred_region
            %s554 = sshllo.u32 0, 1
            loop: start=0, step=1, limit=1
            $region259: #{tpu_custom_call.1} parent=257 // loop_pre_header
              _
            $region260: #{tpu_custom_call.1} parent=257 // loop_header
              %s556 = sphi 0, %s560
              %p557 = scmp.ge.s32.totalorder %s556, 1
              %s561 = sphi %s543, %s543
              %s562 = sphi %s544, %s544
            $region261: #{tpu_custom_call.1} parent=257 // loop_header_branch
              %559 = sbr.rel (%p557) target = $region265
            $region262: #{tpu_custom_call.1} parent=257 // loop_body
              %v563 = vld [vmem:[%s561] sm:%s554]
              %564 = vst [vmem:[%s562] sm:%s554] %v563
            $region263: #{tpu_custom_call.1} parent=257 // loop_footer
              %s560 = sadd.s32 1, %s556
            $region264: #{tpu_custom_call.1} parent=257 // loop_footer_branch
              %555 = sbr.rel target = $region260
            $region265: #{tpu_custom_call.1} parent=257 // loop_exit
              _
          $region258: #{tpu_custom_call.1} parent=69 // pred_fallthru
            _
          // Predicated region
          $region277: #{tpu_custom_call.1} parent=69 // pred_check
            _
          $region278: #{tpu_custom_call.1} parent=69 // pred_check_branch
            %588 = sbr.rel (0) target = $region280
          $region279: #{tpu_custom_call.1} parent=69 // pred_region
            %589 = vsyncadd %s545, 16
          $region280: #{tpu_custom_call.1} parent=69 // pred_fallthru
            _
          %s590 = sld [smem:[#allocation5 + $0x7]]
          %s591 = scalar_lea.vmem %s1, %s590
          %s592 = scalar_lea.vmem [#allocation2], 7
          %s593 = scalar_lea.sflag [#allocation3], 7
          %p595 = scmp.lt.u32.totalorder 1, 8
          %p596 = pneg %p595
          // Predicated region
          $region281: #{tpu_custom_call.1} parent=69 // pred_check
            _
          $region282: #{tpu_custom_call.1} parent=69 // pred_check_branch
            %598 = sbr.rel (%p595) target = $region284
          $region283: #{tpu_custom_call.1} parent=69 // pred_region
            %s613 = sand.u32 1, 7
            %p614 = scmp.eq.s32.totalorder %s613, 0
            %p615 = pneg %p614
            // Predicated region
            $region296: #{tpu_custom_call.1} parent=283 // pred_check
              _
            $region297: #{tpu_custom_call.1} parent=283 // pred_check_branch
              %617 = sbr.rel (%p614) target = $region299
            $region298: #{tpu_custom_call.1} parent=283 // pred_region
              %s618 = sand.u32 1, 7
              %s619 = ssub.s32 1, %s618
              %s620 = scalar_lea.vmem %s591, %s619
              %s621 = ssub.s32 1, %s618
              %s622 = scalar_lea.vmem %s592, %s621 [#allocation2]
              %s623 = sshllo.u32 0, %s618
              loop: start=0, step=1, limit=1
              $region300: #{tpu_custom_call.1} parent=298 // loop_pre_header
                _
              $region301: #{tpu_custom_call.1} parent=298 // loop_header
                %s625 = sphi 0, %s629
                %p626 = scmp.ge.s32.totalorder %s625, 1
                %s630 = sphi %s620, %s620
                %s631 = sphi %s622, %s622
              $region302: #{tpu_custom_call.1} parent=298 // loop_header_branch
                %628 = sbr.rel (%p626) target = $region306
              $region303: #{tpu_custom_call.1} parent=298 // loop_body
                %v632 = vld [vmem:[%s630] sm:%s623]
                %633 = vst [vmem:[%s631] sm:%s623] %v632
              $region304: #{tpu_custom_call.1} parent=298 // loop_footer
                %s629 = sadd.s32 1, %s625
              $region305: #{tpu_custom_call.1} parent=298 // loop_footer_branch
                %624 = sbr.rel target = $region301
              $region306: #{tpu_custom_call.1} parent=298 // loop_exit
                _
            $region299: #{tpu_custom_call.1} parent=283 // pred_fallthru
              _
          $region284: #{tpu_custom_call.1} parent=69 // pred_fallthru
            _
          // Predicated region
          $region285: #{tpu_custom_call.1} parent=69 // pred_check
            %p599 = pneg %p595
          $region286: #{tpu_custom_call.1} parent=69 // pred_check_branch
            %601 = sbr.rel (%p599) target = $region288
          $region287: #{tpu_custom_call.1} parent=69 // pred_region
            %s602 = sshllo.u32 0, 1
            loop: start=0, step=1, limit=1
            $region289: #{tpu_custom_call.1} parent=287 // loop_pre_header
              _
            $region290: #{tpu_custom_call.1} parent=287 // loop_header
              %s604 = sphi 0, %s608
              %p605 = scmp.ge.s32.totalorder %s604, 1
              %s609 = sphi %s591, %s591
              %s610 = sphi %s592, %s592
            $region291: #{tpu_custom_call.1} parent=287 // loop_header_branch
              %607 = sbr.rel (%p605) target = $region295
            $region292: #{tpu_custom_call.1} parent=287 // loop_body
              %v611 = vld [vmem:[%s609] sm:%s602]
              %612 = vst [vmem:[%s610] sm:%s602] %v611
            $region293: #{tpu_custom_call.1} parent=287 // loop_footer
              %s608 = sadd.s32 1, %s604
            $region294: #{tpu_custom_call.1} parent=287 // loop_footer_branch
              %603 = sbr.rel target = $region290
            $region295: #{tpu_custom_call.1} parent=287 // loop_exit
              _
          $region288: #{tpu_custom_call.1} parent=69 // pred_fallthru
            _
          // Predicated region
          $region307: #{tpu_custom_call.1} parent=69 // pred_check
            _
          $region308: #{tpu_custom_call.1} parent=69 // pred_check_branch
            %636 = sbr.rel (0) target = $region310
          $region309: #{tpu_custom_call.1} parent=69 // pred_region
            %637 = vsyncadd %s593, 16
          $region310: #{tpu_custom_call.1} parent=69 // pred_fallthru
            _
          %s638 = sld [smem:[#allocation5]]
          %s639 = smul.u32 1, 1
          %s640 = sshll.u32 %s639, 4
          %641 = dma.done [#allocation3], %s640
          %s642 = sld [smem:[#allocation5 + $0x1]]
          %s643 = sshll.u32 %s639, 4
          %644 = dma.done %s305, %s643
          %s645 = sld [smem:[#allocation5 + $0x2]]
          %s646 = sshll.u32 %s639, 4
          %647 = dma.done %s353, %s646
          %s648 = sld [smem:[#allocation5 + $0x3]]
          %s649 = sshll.u32 %s639, 4
          %650 = dma.done %s401, %s649
          %s651 = sld [smem:[#allocation5 + $0x4]]
          %s652 = sshll.u32 %s639, 4
          %653 = dma.done %s449, %s652
          %s654 = sld [smem:[#allocation5 + $0x5]]
          %s655 = sshll.u32 %s639, 4
          %656 = dma.done %s497, %s655
          %s657 = sld [smem:[#allocation5 + $0x6]]
          %s658 = sshll.u32 %s639, 4
          %659 = dma.done %s545, %s658
          %s660 = sld [smem:[#allocation5 + $0x7]]
          %s661 = sshll.u32 %s639, 4
          %662 = dma.done %s593, %s661
          %v663 = vld [vmem:[#allocation2] sm:$0xff]
          %vm664 = vcmask 523264
          %665 = vst.msk [vmem:[#allocation9] sm:$0xff] %vm664, %v663
        $region70: #{tpu_custom_call.1} parent=61 // pred_fallthru
          _
        %v666 = vld [vmem:[#allocation2] sm:$0xff]
        %v667 = vld [vmem:[%s225] sm:$0xff]
        %v668 = vld [vmem:[%s225 + $0x8] sm:$0xff]
        %v669 = vld [vmem:[%s225 + $0x10] sm:$0xff]
        %v670 = vld [vmem:[%s225 + $0x18] sm:$0xff]
        %v671 = vld [vmem:[%s225 + $0x20] sm:$0xff]
        %v672 = vld [vmem:[%s225 + $0x28] sm:$0xff]
        %v673 = vld [vmem:[%s225 + $0x30] sm:$0xff]
        %v674 = vld [vmem:[%s225 + $0x38] sm:$0xff]
        %v675 = vld [vmem:[%s251] sm:$0x1]
        %v677 = vlaneseq
        %v678 = vshrl.u32 %v677, 7
        %v679 = vsub.s32 0, %v678
        %v680 = vrot.slane %v675, %v679
        %vm682 = vcmask 523264
        %v684 = vsel %vm682, %v666, 0
        %686 = vmatprep.subr.mxu0 0.0
        %687 = vmatpush1.msra.mxu0 %v667
        %688 = vmatprep.subr.mxu0 0.0
        %689 = vmatpush1.msra.mxu0 %v668
        %690 = vmatprep.subr.mxu0 0.0
        %691 = vmatpush1.msra.mxu0 %v669
        %692 = vmatprep.subr.mxu0 0.0
        %693 = vmatpush1.msra.mxu0 %v670
        %694 = vmatprep.subr.mxu0 0.0
        %695 = vmatpush1.msra.mxu0 %v671
        %696 = vmatprep.subr.mxu0 0.0
        %697 = vmatpush1.msra.mxu0 %v672
        %698 = vmatprep.subr.mxu0 0.0
        %699 = vmatpush1.msra.mxu0 %v673
        %700 = vmatprep.subr.mxu0 0.0
        %701 = vmatpush1.msra.mxu0 %v674
        %702 = vmatprep.subr.mxu0 0.0
        %703 = vmatpush1.msra.mxu0 0.0
        %704 = vmatprep.subr.mxu0 0.0
        %705 = vmatpush1.msra.mxu0 0.0
        %706 = vmatprep.subr.mxu0 0.0
        %707 = vmatpush1.msra.mxu0 0.0
        %708 = vmatprep.subr.mxu0 0.0
        %709 = vmatpush1.msra.mxu0 0.0
        %710 = vmatprep.subr.mxu0 0.0
        %711 = vmatpush1.msra.mxu0 0.0
        %712 = vmatprep.subr.mxu0 0.0
        %713 = vmatpush1.msra.mxu0 0.0
        %714 = vmatprep.subr.mxu0 0.0
        %715 = vmatpush1.msra.mxu0 0.0
        %716 = vmatprep.subr.mxu0 0.0
        %717 = vmatpush1.msra.mxu0 0.0
        %718 = vmatprep.subr.mxu0 0.0
        %719 = vmatpush1.msra.mxu0 0.0
        %720 = vmatprep.subr.mxu0 0.0
        %721 = vmatpush1.msra.mxu0 0.0
        %722 = vmatprep.subr.mxu0 0.0
        %723 = vmatpush1.msra.mxu0 0.0
        %724 = vmatprep.subr.mxu0 0.0
        %725 = vmatpush1.msra.mxu0 0.0
        %726 = vmatprep.subr.mxu0 0.0
        %727 = vmatpush1.msra.mxu0 0.0
        %728 = vmatprep.subr.mxu0 0.0
        %729 = vmatpush1.msra.mxu0 0.0
        %730 = vmatprep.subr.mxu0 0.0
        %731 = vmatpush1.msra.mxu0 0.0
        %732 = vmatprep.subr.mxu0 0.0
        %733 = vmatpush1.msra.mxu0 0.0
        %734 = vmatprep.subr.mxu0 0.0
        %735 = vmatpush1.msra.mxu0 0.0
        %736 = vmatprep.subr.mxu0 0.0
        %737 = vmatpush1.msra.mxu0 0.0
        %738 = vmatprep.subr.mxu0 0.0
        %739 = vmatpush1.msra.mxu0 0.0
        %740 = vmatprep.subr.mxu0 0.0
        %741 = vmatpush1.msra.mxu0 0.0
        %742 = vmatprep.subr.mxu0 0.0
        %743 = vmatpush1.msra.mxu0 0.0
        %744 = vmatprep.subr.mxu0 0.0
        %745 = vmatpush1.msra.mxu0 0.0
        %746 = vmatprep.subr.mxu0 0.0
        %747 = vmatpush1.msra.mxu0 0.0
        %748 = vmatprep.subr.mxu0 0.0
        %749 = vmatpush1.msra.mxu0 0.0
        %750 = vmatprep.mubr.f32.mxu0 0.0
        %751 = vmatmul.mubr.f32.gmra.mrb[0].mxu0 %v684
        %v752 = vpop.f32.mrb[0].mxu0
        %v753 = vadd.f32 %v680, %v752
        %v754 = vpop.f32.mrb[0].mxu0
        %755 = vdwg.mxu0
        %756 = vst [vmem:[%s246] sm:$0xff] %v753
        %s757 = sand.u32 %s87, 1
        %s758 = scalar_lea.sflag [#allocation8], %s757
        %s759 = sand.u32 %s87, 1
        %s760 = smul.addr %s759, 8
        %s761 = scalar_lea.vmem [#allocation7], %s760
        // Predicated region
        $region311: #{tpu_custom_call.1} parent=61 // pred_check
          %p762 = pneg %p97
        $region312: #{tpu_custom_call.1} parent=61 // pred_check_branch
          %764 = sbr.rel (%p762) target = $region314
        $region313: #{tpu_custom_call.1} parent=61 // pred_region
          %s766 = ssub.s32 128, 128
          %767 = vsyncadd %s758, %s766
          %s768 = smul.addr %s27, 128
          %s769 = scalar_lea.hbm %s4, %s768
          %s771 = sshll.u32 %s761, 4
          %s772 = int_to_ptr.vmem [resolvable:$true] %s771
          %774 = dma.vmem_to_hbm [thread:$0]  %s772, 128, %s769, %s758
        $region314: #{tpu_custom_call.1} parent=61 // pred_fallthru
          _
        // Predicated region
        $region315: #{tpu_custom_call.1} parent=61 // pred_check
          %p775 = pneg %p118
        $region316: #{tpu_custom_call.1} parent=61 // pred_check_branch
          %777 = sbr.rel (%p775) target = $region318
        $region317: #{tpu_custom_call.1} parent=61 // pred_region
          %s779 = ssub.s32 128, 128
          %780 = vsyncadd [#allocation10], %s779
          %s782 = sshll.u32 [#allocation9], 4
          %s783 = int_to_ptr.vmem [resolvable:$true] %s782
          %785 = dma.vmem_to_hbm [thread:$0]  %s783, 128, %s5, [#allocation10]
        $region318: #{tpu_custom_call.1} parent=61 // pred_fallthru
          _
        // Predicated region
        $region319: #{tpu_custom_call.1} parent=61 // pred_check
          %p786 = pneg %p118
        $region320: #{tpu_custom_call.1} parent=61 // pred_check_branch
          %788 = sbr.rel (%p786) target = $region322
        $region321: #{tpu_custom_call.1} parent=61 // pred_region
          %789 = dma.done [#allocation10], 128
        $region322: #{tpu_custom_call.1} parent=61 // pred_fallthru
          _
      $region62: #{tpu_custom_call.1} parent=5 // pred_fallthru
        _
      %p790 = scmp.le.s32.totalorder 2, %s22
      // Predicated region
      $region323: #{tpu_custom_call.1} parent=5 // pred_check
        %p791 = pneg %p790
      $region324: #{tpu_custom_call.1} parent=5 // pred_check_branch
        %793 = sbr.rel (%p791) target = $region326
      $region325: #{tpu_custom_call.1} parent=5 // pred_region
        %s794 = ssub.s32 %s22, 2
        // Predicated region
        $region327: #{tpu_custom_call.1} parent=325 // pred_check
          %p795 = pneg %p103
        $region328: #{tpu_custom_call.1} parent=325 // pred_check_branch
          %797 = sbr.rel (%p795) target = $region330
        $region329: #{tpu_custom_call.1} parent=325 // pred_region
          %s798 = sand.u32 %s88, 1
          %s799 = scalar_lea.sflag [#allocation8], %s798
          %s800 = sand.u32 %s88, 1
          %s801 = smul.addr %s800, 8
          %s802 = scalar_lea.vmem [#allocation7], %s801
          %803 = dma.done %s799, 128
        $region330: #{tpu_custom_call.1} parent=325 // pred_fallthru
          _
      $region326: #{tpu_custom_call.1} parent=5 // pred_fallthru
        _
    $region6: #{tpu_custom_call.1} parent=1 // loop_footer
      %s26 = sadd.s32 1, %s22
    $region7: #{tpu_custom_call.1} parent=1 // loop_footer_branch
      %21 = sbr.rel target = $region3
    $region8: #{tpu_custom_call.1} parent=1 // loop_exit
      _
    %804 = vsyncpa [#allocation8], 1
    %s805 = scalar_lea.sflag [#allocation8], 1
    %806 = vsyncpa %s805, 1
    %807 = vsyncpa [#allocation10], 1
  %808 = vsyncmov [#allocation3]
  %s809 = vpop.sfrf %808
  %p810 = scmp.eq.s32.totalorder %s809, 0
  %p811 = pneg %p810
  %813 = shalt.err (%p811)
  %s814 = scalar_lea.sflag [#allocation3], 1
  %815 = vsyncmov %s814
  %s816 = vpop.sfrf %815
  %p817 = scmp.eq.s32.totalorder %s816, 0
  %p818 = pneg %p817
  %820 = shalt.err (%p818)
  %s821 = scalar_lea.sflag [#allocation3], 2
  %822 = vsyncmov %s821
  %s823 = vpop.sfrf %822
  %p824 = scmp.eq.s32.totalorder %s823, 0
  %p825 = pneg %p824
  %827 = shalt.err (%p825)
  %s828 = scalar_lea.sflag [#allocation3], 3
  %829 = vsyncmov %s828
  %s830 = vpop.sfrf %829
  %p831 = scmp.eq.s32.totalorder %s830, 0
  %p832 = pneg %p831
  %834 = shalt.err (%p832)
  %s835 = scalar_lea.sflag [#allocation3], 4
  %836 = vsyncmov %s835
  %s837 = vpop.sfrf %836
  %p838 = scmp.eq.s32.totalorder %s837, 0
  %p839 = pneg %p838
  %841 = shalt.err (%p839)
  %s842 = scalar_lea.sflag [#allocation3], 5
  %843 = vsyncmov %s842
  %s844 = vpop.sfrf %843
  %p845 = scmp.eq.s32.totalorder %s844, 0
  %p846 = pneg %p845
  %848 = shalt.err (%p846)
  %s849 = scalar_lea.sflag [#allocation3], 6
  %850 = vsyncmov %s849
  %s851 = vpop.sfrf %850
  %p852 = scmp.eq.s32.totalorder %s851, 0
  %p853 = pneg %p852
  %855 = shalt.err (%p853)
  %s856 = scalar_lea.sflag [#allocation3], 7
  %857 = vsyncmov %s856
  %s858 = vpop.sfrf %857
  %p859 = scmp.eq.s32.totalorder %s858, 0
  %p860 = pneg %p859
  %862 = shalt.err (%p860)

</llo_original>
